<compile_context>
chip_gen: v6e
topology: v6e:2x2x1
jax: 0.10.0
libtpu: 0.0.40
codegen_flags: <defaults>
</compile_context>

<pallas_src>
import functools
import math

import jax
import jax.numpy as jnp
from jax.experimental import pallas as pl
from jax.experimental.pallas import tpu as pltpu

_NQ = 10          # 9 + 1 queries of the module
_NQ_PAD = 16      # lane-padded query count written by the kernel
_BN_EPS = 1e-5


def _round_up(n, m):
    return ((n + m - 1) // m) * m


def _gelu_tanh(x):
    # tanh-approx GELU; one EUP tanh + a few VPU ops (tolerance comfortably admits it).
    c0 = math.sqrt(2.0 / math.pi)
    return 0.5 * x * (1.0 + jnp.tanh(c0 * (x + 0.044715 * (x * x * x))))


# --------------------------------------------------------------------------- fused kernel
def _fused_kernel(x_ref, *refs, bt, hp_in, hp_scr, layers, w4, nq_pad):
    """One grid step = `bt` batch elements; every activation stays in VMEM.

    x_ref   (bt*hp_in, W*Cin)   zero-padded images; sample bi at rows [bi*hp_in, ...),
                                row bi*hp_in is the top conv-pad row, data at +1..+H.
    per conv layer: ms (3, Win*Cin, Wout*Cout) bf16 -- column shift x weights x BN scale
    sh_ref  (nl, sh_w) f32      folded conv-bias + BN(eval) shift, tiled over Wout
    sw_ref  (w4, w4*C, 2*nq_pad) bf16  token gather folded with [scale*Wk q^T | Wv Wproj Wdown]
    o_ref   (bt, 1, nq_pad)     attention output (queries 10..15 are lane padding)
    pad_ref (bt*hp_scr, scr_w)  f32 scratch: zero-padded intermediate feature maps
    """
    nl = len(layers)
    ms_refs = refs[:nl]
    sh_ref, sw_ref, o_ref, pad_ref = refs[nl:nl + 4]

    # Zero the scratch so the implicit conv padding rows read as zero.
    pad_ref[...] = jnp.zeros_like(pad_ref)

    src_ref, src_hp = x_ref, hp_in
    feats = None                                      # per-sample last-layer feature maps
    for li, (h_in, w_in, h_out, w_out) in enumerate(layers):
        ms = ms_refs[li]
        sh_row = sh_ref[li:li + 1, :w_out]            # (1, w_out) folded bias + BN shift
        last = li == nl - 1
        # Fat-M (cross-sample) path only when per-sample rows are sublane aligned, so the
        # concat / value slices stay on (8,128) tile boundaries.
        fat = bt > 1 and h_out % 8 == 0

        if fat:
            acc = None
            for dy in range(3):
                rows = jnp.concatenate(
                    [src_ref[pl.ds(bi * src_hp + dy, h_out, stride=2), :w_in]
                     for bi in range(bt)], axis=0)                       # (bt*h_out, w_in)
                part = jnp.dot(rows.astype(jnp.bfloat16), ms[dy],
                               preferred_element_type=jnp.float32)
                acc = part if acc is None else acc + part
            y = acc + sh_row
            if not last:
                y = _gelu_tanh(y)
            y_list = [y[bi * h_out:(bi + 1) * h_out, :] for bi in range(bt)]
        else:
            y_list = []
            for bi in range(bt):
                acc = None
                for dy in range(3):
                    rows = src_ref[pl.ds(bi * src_hp + dy, h_out, stride=2), :w_in]
                    part = jnp.dot(rows.astype(jnp.bfloat16), ms[dy],
                                   preferred_element_type=jnp.float32)
                    acc = part if acc is None else acc + part
                yb = acc + sh_row
                y_list.append(yb if last else _gelu_tanh(yb))

        if last:
            feats = y_list
        else:
            zero_row = jnp.zeros((1, pad_ref.shape[1]), pad_ref.dtype)
            for bi in range(bt):
                r0 = bi * hp_scr
                pad_ref[pl.ds(r0 + 1, h_out), :w_out] = y_list[bi]
                pad_ref[pl.ds(r0 + 1 + h_out, 1), :] = zero_row          # bottom conv pad row
            src_ref, src_hp = pad_ref, hp_scr

    # Attention head: softmax over the h4*w4 tokens (order irrelevant) and a weighted sum of
    # the folded v->proj->down scalar per token.  Per sample; the whole tail is a few vregs.
    for bi in range(bt):
        f_bf = feats[bi].astype(jnp.bfloat16)                            # (h4, w4*C)
        blocks = [jnp.dot(f_bf, sw_ref[wo], preferred_element_type=jnp.float32)
                  for wo in range(w4)]                                   # each (h4, 2*nq_pad)
        mx = blocks[0][:, :nq_pad].max(axis=0, keepdims=True)
        for wo in range(1, w4):
            mx = jnp.maximum(mx, blocks[wo][:, :nq_pad].max(axis=0, keepdims=True))
        denom = None
        num = None
        for wo in range(w4):
            p = jnp.exp(blocks[wo][:, :nq_pad] - mx)                     # (h4, nq_pad)
            u = blocks[wo][:, nq_pad:nq_pad + 1]                         # (h4, 1)
            dsum = jnp.sum(p, axis=0, keepdims=True)
            nsum = jnp.sum(p * u, axis=0, keepdims=True)
            denom = dsum if denom is None else denom + dsum
            num = nsum if num is None else num + nsum
        o_ref[bi] = num * pl.reciprocal(denom, approx=True)              # (1, nq_pad)


# --------------------------------------------------------------------------- wrapper helpers
def _col_weight(w_in, w_out, wk_dy):
    """wk_dy: (3, cin, cout) over dx, BN scale already folded into cout.
    M[w*cin+ci, wo*cout+co] = wk_dy[dx,ci,co] iff w == 2*wo + dx - 1 (zero column padding)."""
    cin, cout = wk_dy.shape[1], wk_dy.shape[2]
    wi = jnp.arange(w_in)[:, None]
    wo = jnp.arange(w_out)[None, :]
    m = jnp.zeros((w_in * cin, w_out * cout), jnp.float32)
    for dx in range(3):
        sel = (wi == (2 * wo + dx - 1)).astype(jnp.float32)
        m = m + jnp.kron(sel, wk_dy[dx])
    return m


# --------------------------------------------------------------------------- forward
def matrix_predictor_forward(x_nchw, params, dim, num_heads=1, batch_tile=None):
    scale = (dim // num_heads) ** (-0.5)

    x = jnp.transpose(x_nchw, (0, 2, 3, 1)).astype(jnp.float32)          # NCHW -> NHWC
    b, h, w, cin0 = x.shape
    if batch_tile is None:
        # >=2 grid steps (one per v7x TensorCore); fat M per step on single-TC v5e/v6e.
        batch_tile = b // 2 if (b % 2 == 0 and b >= 2) else 1
    bt = batch_tile
    assert b % bt == 0
    nl = len(params["convs"])

    # Per-layer geometry.
    chans = [cin0] + [cp["w"].shape[0] for cp in params["convs"]]
    hs, ws = [h], [w]
    for _ in range(nl):
        hs.append((hs[-1] + 1) // 2)
        ws.append((ws[-1] + 1) // 2)
    layers = tuple((hs[l], ws[l] * chans[l], hs[l + 1], ws[l + 1] * chans[l + 1])
                   for l in range(nl))

    hp_in = _round_up(h + 2, 8)                          # per-sample padded image rows
    hp_scr = _round_up(hs[1] + 2, 8)                     # per-sample scratch rows
    scr_w = max(layers[l][3] for l in range(nl - 1)) if nl > 1 else 8
    sh_w = max(layers[l][3] for l in range(nl))

    # Zero-padded NHWC-flat input: sample bi occupies rows [bi*hp_in, (bi+1)*hp_in),
    # with the image at rows +1..+H and zeros elsewhere (implicit conv row padding).
    x_pad = jnp.zeros((b, hp_in, w * cin0), jnp.float32)
    x_pad = x_pad.at[:, 1:1 + h, :].set(x.reshape(b, h, w * cin0))
    x_flat = x_pad.reshape(b * hp_in, w * cin0)

    # Conv structure matrices (BN scale folded into the weights) + packed BN shifts.
    ms_list, sh_rows = [], []
    for l, cp in enumerate(params["convs"]):
        cout = chans[l + 1]
        w_in_sp, w_out_sp = ws[l], ws[l + 1]
        inv = 1.0 / jnp.sqrt(cp["var"] + _BN_EPS)
        sc = cp["gamma"] * inv
        sh = cp["beta"] + (cp["b"] - cp["mean"]) * sc
        wk = jnp.transpose(cp["w"], (2, 3, 1, 0)) * sc[None, None, None, :]  # (3,3,cin,cout)
        ms = jnp.stack([_col_weight(w_in_sp, w_out_sp, wk[dy]) for dy in range(3)])
        ms_list.append(ms.astype(jnp.bfloat16))
        sh_rows.append(jnp.pad(jnp.tile(sh, w_out_sp), (0, sh_w - w_out_sp * cout)))
    sh_pack = jnp.stack(sh_rows).astype(jnp.float32)                      # (nl, sh_w)

    # Attention folds (exact algebra): bk cancels in the softmax; bv/bproj/bdown collapse to a
    # single scalar added after the kernel; k-proj and v->proj->down fold into one constant.
    c = chans[-1]
    h4, w4 = hs[-1], ws[-1]
    q = params["q"][0]                                                    # (10, C)
    wq = scale * (params["wk"] @ q.T)                                     # (C, 10)
    wdown_col = params["wdown"].reshape(c, 1)
    pd = params["wproj"] @ wdown_col                                      # (C, 1)
    wu = params["wv"] @ pd                                                # (C, 1)
    wcat = jnp.zeros((c, 2 * _NQ_PAD), jnp.float32)
    wcat = wcat.at[:, :_NQ].set(wq).at[:, _NQ_PAD:_NQ_PAD + 1].set(wu)
    sw = jnp.zeros((w4, w4 * c, 2 * _NQ_PAD), jnp.float32)
    for wo in range(w4):
        sw = sw.at[wo, wo * c:(wo + 1) * c, :].set(wcat)
    sw = sw.astype(jnp.bfloat16)
    bias_tail = (params["bv"] @ pd + params["bproj"] @ wdown_col + params["bdown"]).reshape(())

    consts = ms_list + [sh_pack, sw]

    def _const_spec(a):
        nd = a.ndim
        return pl.BlockSpec(a.shape, lambda i, _nd=nd: (0,) * _nd)

    kernel = functools.partial(_fused_kernel, bt=bt, hp_in=hp_in, hp_scr=hp_scr,
                               layers=layers, w4=w4, nq_pad=_NQ_PAD)

    out = pl.pallas_call(
        kernel,
        out_shape=jax.ShapeDtypeStruct((b, 1, _NQ_PAD), jnp.float32),
        grid=(b // bt,),
        in_specs=[pl.BlockSpec((bt * hp_in, w * cin0), lambda i: (i, 0))]
                 + [_const_spec(a) for a in consts],
        out_specs=pl.BlockSpec((bt, 1, _NQ_PAD), lambda i: (i, 0, 0)),
        scratch_shapes=[pltpu.VMEM((bt * hp_scr, scr_w), jnp.float32)],
        compiler_params=pltpu.CompilerParams(
            dimension_semantics=("parallel",),
            vmem_limit_bytes=32 * 1024 * 1024),
    )(x_flat, *consts)

    out10 = out[:, 0, :_NQ] + bias_tail                                   # (B, 10)
    ccm_matrix = 0.1 * out10[:, :9].reshape(b, 3, 3) + jnp.eye(3, dtype=out10.dtype)
    distance = jax.nn.relu(out10[:, 9:]) + 1.0                            # (B, 1)
    return ccm_matrix, distance


# --------------------------------------------------------------------------- pure-JAX reference
def matrix_predictor_reference(x_nchw, params, dim, num_heads=1):
    scale = (dim // num_heads) ** (-0.5)
    x = jnp.transpose(x_nchw, (0, 2, 3, 1)).astype(jnp.float32)
    b = x.shape[0]
    feat = x
    nconv = len(params["convs"])
    for li, cp in enumerate(params["convs"]):
        wk = jnp.transpose(cp["w"], (2, 3, 1, 0))
        feat = jax.lax.conv_general_dilated(
            feat, wk, window_strides=(2, 2), padding=((1, 1), (1, 1)),
            dimension_numbers=("NHWC", "HWIO", "NHWC")) + cp["b"]
        inv = 1.0 / jnp.sqrt(cp["var"] + _BN_EPS)
        feat = (feat - cp["mean"]) * (cp["gamma"] * inv) + cp["beta"]
        if li < nconv - 1:
            feat = jax.nn.gelu(feat, approximate=False)
    c = feat.shape[-1]
    d_x = feat.reshape(b, -1, c)
    q = params["q"][0]
    k = d_x @ params["wk"] + params["bk"]
    v = d_x @ params["wv"] + params["bv"]
    attn = jax.nn.softmax(jnp.einsum("qc,bnc->bqn", q, k) * scale, axis=-1)
    out = jnp.einsum("bqn,bnc->bqc", attn, v)
    out = out @ params["wproj"] + params["bproj"]
    down = (out @ params["wdown"].reshape(c, 1) + params["bdown"])[..., 0]  # (B, 10)
    ccm = 0.1 * down[:, :9].reshape(b, 3, 3) + jnp.eye(3, dtype=down.dtype)
    dist = jax.nn.relu(down[:, 9:]) + 1.0
    return ccm, dist


# --------------------------------------------------------------------------- parameters
def init_params(key, dim):
    ks = jax.random.split(key, 20)
    chans = [3, dim // 8, dim // 4, dim // 2, dim]
    convs = []
    i = 0
    for li in range(4):
        cin, cout = chans[li], chans[li + 1]
        w = 0.1 * jax.random.normal(ks[i], (cout, cin, 3, 3), jnp.float32); i += 1
        bb = 0.1 * jax.random.normal(ks[i], (cout,), jnp.float32); i += 1
        convs.append(dict(
            w=w, b=bb,
            gamma=jnp.ones((cout,), jnp.float32), beta=jnp.zeros((cout,), jnp.float32),
            mean=jnp.zeros((cout,), jnp.float32), var=jnp.ones((cout,), jnp.float32),
        ))
    params = dict(convs=convs)
    params["q"] = jax.random.uniform(ks[i], (1, 10, dim), jnp.float32); i += 1       # torch.rand
    for name in ("k", "v", "proj"):
        params["w" + name] = 0.1 * jax.random.normal(ks[i], (dim, dim), jnp.float32); i += 1
        params["b" + name] = 0.1 * jax.random.normal(ks[i], (dim,), jnp.float32); i += 1
    params["wdown"] = 0.1 * jax.random.normal(ks[i], (dim,), jnp.float32); i += 1     # Linear(dim,1)
    params["bdown"] = 0.1 * jax.random.normal(ks[i], (1,), jnp.float32); i += 1
    return params


# --------------------------------------------------------------------------- main
if __name__ == "__main__":
    key = jax.random.PRNGKey(0)
    kx, kp = jax.random.split(key)

    dim = 32                 # channels: 3 -> 4 -> 8 -> 16 -> 32
    B, H, W = 4, 32, 32      # spatial /16 -> 2x2 = 4 tokens; grid = 2 steps of 2 samples

    x = jax.random.normal(kx, (B, 3, H, W), jnp.float32)
    params = init_params(kp, dim)

    fwd = jax.jit(lambda xx, pp: matrix_predictor_forward(xx, pp, dim))
    ccm, distance = fwd(x, params)
    jax.block_until_ready((ccm, distance))

    assert ccm.shape == (B, 3, 3) and distance.shape == (B, 1)
    assert bool(jnp.all(jnp.isfinite(ccm))) and bool(jnp.all(distance >= 1.0))

    with jax.default_matmul_precision("highest"):
        ccm_ref, dist_ref = matrix_predictor_reference(x, params, dim)
    assert bool(jnp.allclose(ccm, ccm_ref, atol=2e-2, rtol=2e-2)), \
        float(jnp.max(jnp.abs(ccm - ccm_ref)))
    assert bool(jnp.allclose(distance, dist_ref, atol=2e-2, rtol=2e-2)), \
        float(jnp.max(jnp.abs(distance - dist_ref)))

    print("KERNEL_OK")
</pallas_src>

<mosaic_0001>
module attributes {stable_mosaic.version = 11 : i64} {
  func.func @_fused_kernel(%arg0: i32, %arg1: memref<80x96xf32, #tpu.memory_space<vmem>>, %arg2: memref<3x96x64xbf16, #tpu.memory_space<vmem>>, %arg3: memref<3x64x64xbf16, #tpu.memory_space<vmem>>, %arg4: memref<3x64x64xbf16, #tpu.memory_space<vmem>>, %arg5: memref<3x64x64xbf16, #tpu.memory_space<vmem>>, %arg6: memref<4x64xf32, #tpu.memory_space<vmem>>, %arg7: memref<2x64x32xbf16, #tpu.memory_space<vmem>>, %arg8: memref<2x1x16xf32, #tpu.memory_space<vmem>>, %arg9: memref<48x64xf32, #tpu.memory_space<vmem>>) attributes {dimension_semantics = [#tpu.dimension_semantics<parallel>], iteration_bounds = array<i64: 2>, scalar_prefetch = 0 : i64, scratch_operands = 1 : i64, tpu.core_type = #tpu.core_type<tc>, window_params = [{transform_indices = @transform_0, window_bounds = array<i64: 80, 96>}, {pipeline_mode = #tpu.pipeline_mode<synchronous>, transform_indices = @transform_1, window_bounds = array<i64: 3, 96, 64>}, {pipeline_mode = #tpu.pipeline_mode<synchronous>, transform_indices = @transform_2, window_bounds = array<i64: 3, 64, 64>}, {pipeline_mode = #tpu.pipeline_mode<synchronous>, transform_indices = @transform_3, window_bounds = array<i64: 3, 64, 64>}, {pipeline_mode = #tpu.pipeline_mode<synchronous>, transform_indices = @transform_4, window_bounds = array<i64: 3, 64, 64>}, {pipeline_mode = #tpu.pipeline_mode<synchronous>, transform_indices = @transform_5, window_bounds = array<i64: 4, 64>}, {pipeline_mode = #tpu.pipeline_mode<synchronous>, transform_indices = @transform_6, window_bounds = array<i64: 2, 64, 32>}, {transform_indices = @transform_7, window_bounds = array<i64: 2, 1, 16>}]} {
    %cst = arith.constant 0.000000e+00 : f32
    %0 = vector.broadcast %cst : f32 to vector<48x64xf32>
    %c0 = arith.constant 0 : index
    %c0_0 = arith.constant 0 : index
    %1 = vector.load %arg9[%c0, %c0_0] : memref<48x64xf32, #tpu.memory_space<vmem>>, vector<48x64xf32>
    tpu.vector_store %arg9[%c0, %c0_0], %0 {strides = array<i32>} : memref<48x64xf32, #tpu.memory_space<vmem>>, vector<48x64xf32>,
    %c0_1 = arith.constant 0 : index
    %c0_2 = arith.constant 0 : index
    %2 = vector.load %arg6[%c0_1, %c0_2] : memref<4x64xf32, #tpu.memory_space<vmem>>, vector<1x64xf32>
    %c0_3 = arith.constant 0 : index
    %c0_4 = arith.constant 0 : index
    %3 = tpu.strided_load %arg1[%c0_3, %c0_4] {strides = array<i32: 2, 1>} : memref<80x96xf32, #tpu.memory_space<vmem>>, vector<16x96xf32>
    %c40 = arith.constant 40 : index
    %c0_5 = arith.constant 0 : index
    %4 = tpu.strided_load %arg1[%c40, %c0_5] {strides = array<i32: 2, 1>} : memref<80x96xf32, #tpu.memory_space<vmem>>, vector<16x96xf32>
    %5 = tpu.concatenate %3, %4 in 0 : vector<16x96xf32>, vector<16x96xf32> -> vector<32x96xf32>
    %6 = arith.truncf %5 : vector<32x96xf32> to vector<32x96xbf16>
    %c0_6 = arith.constant 0 : index
    %c0_7 = arith.constant 0 : index
    %c0_8 = arith.constant 0 : index
    %7 = vector.load %arg2[%c0_6, %c0_7, %c0_8] : memref<3x96x64xbf16, #tpu.memory_space<vmem>>, vector<1x96x64xbf16>
    %8 = vector.shape_cast %7 : vector<1x96x64xbf16> to vector<96x64xbf16>
    %cst_9 = arith.constant dense<0.000000e+00> : vector<32x64xf32>
    %9 = tpu.matmul %6, %8, %cst_9 {dimension_numbers = #tpu.dot_dimension_numbers<[1], [0], [0], [1], [0, 0, 1, 1], [], []>} : vector<32x96xbf16>, vector<96x64xbf16>, vector<32x64xf32> -> vector<32x64xf32>
    %c1 = arith.constant 1 : index
    %c0_10 = arith.constant 0 : index
    %10 = tpu.strided_load %arg1[%c1, %c0_10] {strides = array<i32: 2, 1>} : memref<80x96xf32, #tpu.memory_space<vmem>>, vector<16x96xf32>
    %c41 = arith.constant 41 : index
    %c0_11 = arith.constant 0 : index
    %11 = tpu.strided_load %arg1[%c41, %c0_11] {strides = array<i32: 2, 1>} : memref<80x96xf32, #tpu.memory_space<vmem>>, vector<16x96xf32>
    %12 = tpu.concatenate %10, %11 in 0 : vector<16x96xf32>, vector<16x96xf32> -> vector<32x96xf32>
    %13 = arith.truncf %12 : vector<32x96xf32> to vector<32x96xbf16>
    %c1_12 = arith.constant 1 : index
    %c0_13 = arith.constant 0 : index
    %c0_14 = arith.constant 0 : index
    %14 = vector.load %arg2[%c1_12, %c0_13, %c0_14] : memref<3x96x64xbf16, #tpu.memory_space<vmem>>, vector<1x96x64xbf16>
    %15 = vector.shape_cast %14 : vector<1x96x64xbf16> to vector<96x64xbf16>
    %cst_15 = arith.constant dense<0.000000e+00> : vector<32x64xf32>
    %16 = tpu.matmul %13, %15, %cst_15 {dimension_numbers = #tpu.dot_dimension_numbers<[1], [0], [0], [1], [0, 0, 1, 1], [], []>} : vector<32x96xbf16>, vector<96x64xbf16>, vector<32x64xf32> -> vector<32x64xf32>
    %17 = arith.addf %9, %16 : vector<32x64xf32>
    %c2 = arith.constant 2 : index
    %c0_16 = arith.constant 0 : index
    %18 = tpu.strided_load %arg1[%c2, %c0_16] {strides = array<i32: 2, 1>} : memref<80x96xf32, #tpu.memory_space<vmem>>, vector<16x96xf32>
    %c42 = arith.constant 42 : index
    %c0_17 = arith.constant 0 : index
    %19 = tpu.strided_load %arg1[%c42, %c0_17] {strides = array<i32: 2, 1>} : memref<80x96xf32, #tpu.memory_space<vmem>>, vector<16x96xf32>
    %20 = tpu.concatenate %18, %19 in 0 : vector<16x96xf32>, vector<16x96xf32> -> vector<32x96xf32>
    %21 = arith.truncf %20 : vector<32x96xf32> to vector<32x96xbf16>
    %c2_18 = arith.constant 2 : index
    %c0_19 = arith.constant 0 : index
    %c0_20 = arith.constant 0 : index
    %22 = vector.load %arg2[%c2_18, %c0_19, %c0_20] : memref<3x96x64xbf16, #tpu.memory_space<vmem>>, vector<1x96x64xbf16>
    %23 = vector.shape_cast %22 : vector<1x96x64xbf16> to vector<96x64xbf16>
    %cst_21 = arith.constant dense<0.000000e+00> : vector<32x64xf32>
    %24 = tpu.matmul %21, %23, %cst_21 {dimension_numbers = #tpu.dot_dimension_numbers<[1], [0], [0], [1], [0, 0, 1, 1], [], []>} : vector<32x96xbf16>, vector<96x64xbf16>, vector<32x64xf32> -> vector<32x64xf32>
    %25 = arith.addf %17, %24 : vector<32x64xf32>
    %26 = vector.broadcast %2 : vector<1x64xf32> to vector<32x64xf32>
    %27 = arith.addf %25, %26 : vector<32x64xf32>
    %cst_22 = arith.constant 5.000000e-01 : f32
    %28 = vector.broadcast %cst_22 : f32 to vector<32x64xf32>
    %29 = arith.mulf %28, %27 : vector<32x64xf32>
    %30 = arith.mulf %27, %27 : vector<32x64xf32>
    %31 = arith.mulf %30, %27 : vector<32x64xf32>
    %cst_23 = arith.constant 4.471500e-02 : f32
    %32 = vector.broadcast %cst_23 : f32 to vector<32x64xf32>
    %33 = arith.mulf %32, %31 : vector<32x64xf32>
    %34 = arith.addf %27, %33 : vector<32x64xf32>
    %cst_24 = arith.constant 0.797884583 : f32
    %35 = vector.broadcast %cst_24 : f32 to vector<32x64xf32>
    %36 = arith.mulf %35, %34 : vector<32x64xf32>
    %37 = math.tanh %36 : vector<32x64xf32>
    %cst_25 = arith.constant 1.000000e+00 : f32
    %38 = vector.broadcast %cst_25 : f32 to vector<32x64xf32>
    %39 = arith.addf %38, %37 : vector<32x64xf32>
    %40 = arith.mulf %29, %39 : vector<32x64xf32>
    %41 = vector.extract_strided_slice %40 {offsets = [0, 0], sizes = [16, 64], strides = [1, 1]} : vector<32x64xf32> to vector<16x64xf32>
    %42 = vector.extract_strided_slice %40 {offsets = [16, 0], sizes = [16, 64], strides = [1, 1]} : vector<32x64xf32> to vector<16x64xf32>
    %cst_26 = arith.constant 0.000000e+00 : f32
    %43 = vector.broadcast %cst_26 : f32 to vector<1x64xf32>
    %c1_27 = arith.constant 1 : index
    %c0_28 = arith.constant 0 : index
    %44 = vector.load %arg9[%c1_27, %c0_28] : memref<48x64xf32, #tpu.memory_space<vmem>>, vector<16x64xf32>
    tpu.vector_store %arg9[%c1_27, %c0_28], %41 {strides = array<i32>} : memref<48x64xf32, #tpu.memory_space<vmem>>, vector<16x64xf32>,
    %c17 = arith.constant 17 : index
    %c0_29 = arith.constant 0 : index
    %45 = vector.load %arg9[%c17, %c0_29] : memref<48x64xf32, #tpu.memory_space<vmem>>, vector<1x64xf32>
    tpu.vector_store %arg9[%c17, %c0_29], %43 {strides = array<i32>} : memref<48x64xf32, #tpu.memory_space<vmem>>, vector<1x64xf32>,
    %c25 = arith.constant 25 : index
    %c0_30 = arith.constant 0 : index
    %46 = vector.load %arg9[%c25, %c0_30] : memref<48x64xf32, #tpu.memory_space<vmem>>, vector<16x64xf32>
    tpu.vector_store %arg9[%c25, %c0_30], %42 {strides = array<i32>} : memref<48x64xf32, #tpu.memory_space<vmem>>, vector<16x64xf32>,
    %c41_31 = arith.constant 41 : index
    %c0_32 = arith.constant 0 : index
    %47 = vector.load %arg9[%c41_31, %c0_32] : memref<48x64xf32, #tpu.memory_space<vmem>>, vector<1x64xf32>
    tpu.vector_store %arg9[%c41_31, %c0_32], %43 {strides = array<i32>} : memref<48x64xf32, #tpu.memory_space<vmem>>, vector<1x64xf32>,
    %c1_33 = arith.constant 1 : index
    %c0_34 = arith.constant 0 : index
    %48 = vector.load %arg6[%c1_33, %c0_34] : memref<4x64xf32, #tpu.memory_space<vmem>>, vector<1x64xf32>
    %c0_35 = arith.constant 0 : index
    %c0_36 = arith.constant 0 : index
    %49 = tpu.strided_load %arg9[%c0_35, %c0_36] {strides = array<i32: 2, 1>} : memref<48x64xf32, #tpu.memory_space<vmem>>, vector<8x64xf32>
    %c24 = arith.constant 24 : index
    %c0_37 = arith.constant 0 : index
    %50 = tpu.strided_load %arg9[%c24, %c0_37] {strides = array<i32: 2, 1>} : memref<48x64xf32, #tpu.memory_space<vmem>>, vector<8x64xf32>
    %51 = tpu.concatenate %49, %50 in 0 : vector<8x64xf32>, vector<8x64xf32> -> vector<16x64xf32>
    %52 = arith.truncf %51 : vector<16x64xf32> to vector<16x64xbf16>
    %c0_38 = arith.constant 0 : index
    %c0_39 = arith.constant 0 : index
    %c0_40 = arith.constant 0 : index
    %53 = vector.load %arg3[%c0_38, %c0_39, %c0_40] : memref<3x64x64xbf16, #tpu.memory_space<vmem>>, vector<1x64x64xbf16>
    %54 = vector.shape_cast %53 : vector<1x64x64xbf16> to vector<64x64xbf16>
    %cst_41 = arith.constant dense<0.000000e+00> : vector<16x64xf32>
    %55 = tpu.matmul %52, %54, %cst_41 {dimension_numbers = #tpu.dot_dimension_numbers<[1], [0], [0], [1], [0, 0, 1, 1], [], []>} : vector<16x64xbf16>, vector<64x64xbf16>, vector<16x64xf32> -> vector<16x64xf32>
    %c1_42 = arith.constant 1 : index
    %c0_43 = arith.constant 0 : index
    %56 = tpu.strided_load %arg9[%c1_42, %c0_43] {strides = array<i32: 2, 1>} : memref<48x64xf32, #tpu.memory_space<vmem>>, vector<8x64xf32>
    %c25_44 = arith.constant 25 : index
    %c0_45 = arith.constant 0 : index
    %57 = tpu.strided_load %arg9[%c25_44, %c0_45] {strides = array<i32: 2, 1>} : memref<48x64xf32, #tpu.memory_space<vmem>>, vector<8x64xf32>
    %58 = tpu.concatenate %56, %57 in 0 : vector<8x64xf32>, vector<8x64xf32> -> vector<16x64xf32>
    %59 = arith.truncf %58 : vector<16x64xf32> to vector<16x64xbf16>
    %c1_46 = arith.constant 1 : index
    %c0_47 = arith.constant 0 : index
    %c0_48 = arith.constant 0 : index
    %60 = vector.load %arg3[%c1_46, %c0_47, %c0_48] : memref<3x64x64xbf16, #tpu.memory_space<vmem>>, vector<1x64x64xbf16>
    %61 = vector.shape_cast %60 : vector<1x64x64xbf16> to vector<64x64xbf16>
    %cst_49 = arith.constant dense<0.000000e+00> : vector<16x64xf32>
    %62 = tpu.matmul %59, %61, %cst_49 {dimension_numbers = #tpu.dot_dimension_numbers<[1], [0], [0], [1], [0, 0, 1, 1], [], []>} : vector<16x64xbf16>, vector<64x64xbf16>, vector<16x64xf32> -> vector<16x64xf32>
    %63 = arith.addf %55, %62 : vector<16x64xf32>
    %c2_50 = arith.constant 2 : index
    %c0_51 = arith.constant 0 : index
    %64 = tpu.strided_load %arg9[%c2_50, %c0_51] {strides = array<i32: 2, 1>} : memref<48x64xf32, #tpu.memory_space<vmem>>, vector<8x64xf32>
    %c26 = arith.constant 26 : index
    %c0_52 = arith.constant 0 : index
    %65 = tpu.strided_load %arg9[%c26, %c0_52] {strides = array<i32: 2, 1>} : memref<48x64xf32, #tpu.memory_space<vmem>>, vector<8x64xf32>
    %66 = tpu.concatenate %64, %65 in 0 : vector<8x64xf32>, vector<8x64xf32> -> vector<16x64xf32>
    %67 = arith.truncf %66 : vector<16x64xf32> to vector<16x64xbf16>
    %c2_53 = arith.constant 2 : index
    %c0_54 = arith.constant 0 : index
    %c0_55 = arith.constant 0 : index
    %68 = vector.load %arg3[%c2_53, %c0_54, %c0_55] : memref<3x64x64xbf16, #tpu.memory_space<vmem>>, vector<1x64x64xbf16>
    %69 = vector.shape_cast %68 : vector<1x64x64xbf16> to vector<64x64xbf16>
    %cst_56 = arith.constant dense<0.000000e+00> : vector<16x64xf32>
    %70 = tpu.matmul %67, %69, %cst_56 {dimension_numbers = #tpu.dot_dimension_numbers<[1], [0], [0], [1], [0, 0, 1, 1], [], []>} : vector<16x64xbf16>, vector<64x64xbf16>, vector<16x64xf32> -> vector<16x64xf32>
    %71 = arith.addf %63, %70 : vector<16x64xf32>
    %72 = vector.broadcast %48 : vector<1x64xf32> to vector<16x64xf32>
    %73 = arith.addf %71, %72 : vector<16x64xf32>
    %cst_57 = arith.constant 5.000000e-01 : f32
    %74 = vector.broadcast %cst_57 : f32 to vector<16x64xf32>
    %75 = arith.mulf %74, %73 : vector<16x64xf32>
    %76 = arith.mulf %73, %73 : vector<16x64xf32>
    %77 = arith.mulf %76, %73 : vector<16x64xf32>
    %cst_58 = arith.constant 4.471500e-02 : f32
    %78 = vector.broadcast %cst_58 : f32 to vector<16x64xf32>
    %79 = arith.mulf %78, %77 : vector<16x64xf32>
    %80 = arith.addf %73, %79 : vector<16x64xf32>
    %cst_59 = arith.constant 0.797884583 : f32
    %81 = vector.broadcast %cst_59 : f32 to vector<16x64xf32>
    %82 = arith.mulf %81, %80 : vector<16x64xf32>
    %83 = math.tanh %82 : vector<16x64xf32>
    %cst_60 = arith.constant 1.000000e+00 : f32
    %84 = vector.broadcast %cst_60 : f32 to vector<16x64xf32>
    %85 = arith.addf %84, %83 : vector<16x64xf32>
    %86 = arith.mulf %75, %85 : vector<16x64xf32>
    %87 = vector.extract_strided_slice %86 {offsets = [0, 0], sizes = [8, 64], strides = [1, 1]} : vector<16x64xf32> to vector<8x64xf32>
    %88 = vector.extract_strided_slice %86 {offsets = [8, 0], sizes = [8, 64], strides = [1, 1]} : vector<16x64xf32> to vector<8x64xf32>
    %cst_61 = arith.constant 0.000000e+00 : f32
    %89 = vector.broadcast %cst_61 : f32 to vector<1x64xf32>
    %c1_62 = arith.constant 1 : index
    %c0_63 = arith.constant 0 : index
    %90 = vector.load %arg9[%c1_62, %c0_63] : memref<48x64xf32, #tpu.memory_space<vmem>>, vector<8x64xf32>
    tpu.vector_store %arg9[%c1_62, %c0_63], %87 {strides = array<i32>} : memref<48x64xf32, #tpu.memory_space<vmem>>, vector<8x64xf32>,
    %c9 = arith.constant 9 : index
    %c0_64 = arith.constant 0 : index
    %91 = vector.load %arg9[%c9, %c0_64] : memref<48x64xf32, #tpu.memory_space<vmem>>, vector<1x64xf32>
    tpu.vector_store %arg9[%c9, %c0_64], %89 {strides = array<i32>} : memref<48x64xf32, #tpu.memory_space<vmem>>, vector<1x64xf32>,
    %c25_65 = arith.constant 25 : index
    %c0_66 = arith.constant 0 : index
    %92 = vector.load %arg9[%c25_65, %c0_66] : memref<48x64xf32, #tpu.memory_space<vmem>>, vector<8x64xf32>
    tpu.vector_store %arg9[%c25_65, %c0_66], %88 {strides = array<i32>} : memref<48x64xf32, #tpu.memory_space<vmem>>, vector<8x64xf32>,
    %c33 = arith.constant 33 : index
    %c0_67 = arith.constant 0 : index
    %93 = vector.load %arg9[%c33, %c0_67] : memref<48x64xf32, #tpu.memory_space<vmem>>, vector<1x64xf32>
    tpu.vector_store %arg9[%c33, %c0_67], %89 {strides = array<i32>} : memref<48x64xf32, #tpu.memory_space<vmem>>, vector<1x64xf32>,
    %c2_68 = arith.constant 2 : index
    %c0_69 = arith.constant 0 : index
    %94 = vector.load %arg6[%c2_68, %c0_69] : memref<4x64xf32, #tpu.memory_space<vmem>>, vector<1x64xf32>
    %c0_70 = arith.constant 0 : index
    %c0_71 = arith.constant 0 : index
    %95 = tpu.strided_load %arg9[%c0_70, %c0_71] {strides = array<i32: 2, 1>} : memref<48x64xf32, #tpu.memory_space<vmem>>, vector<4x64xf32>
    %96 = arith.truncf %95 : vector<4x64xf32> to vector<4x64xbf16>
    %c0_72 = arith.constant 0 : index
    %c0_73 = arith.constant 0 : index
    %c0_74 = arith.constant 0 : index
    %97 = vector.load %arg4[%c0_72, %c0_73, %c0_74] : memref<3x64x64xbf16, #tpu.memory_space<vmem>>, vector<1x64x64xbf16>
    %98 = vector.shape_cast %97 : vector<1x64x64xbf16> to vector<64x64xbf16>
    %cst_75 = arith.constant dense<0.000000e+00> : vector<4x64xf32>
    %99 = tpu.matmul %96, %98, %cst_75 {dimension_numbers = #tpu.dot_dimension_numbers<[1], [0], [0], [1], [0, 0, 1, 1], [], []>} : vector<4x64xbf16>, vector<64x64xbf16>, vector<4x64xf32> -> vector<4x64xf32>
    %c1_76 = arith.constant 1 : index
    %c0_77 = arith.constant 0 : index
    %100 = tpu.strided_load %arg9[%c1_76, %c0_77] {strides = array<i32: 2, 1>} : memref<48x64xf32, #tpu.memory_space<vmem>>, vector<4x64xf32>
    %101 = arith.truncf %100 : vector<4x64xf32> to vector<4x64xbf16>
    %c1_78 = arith.constant 1 : index
    %c0_79 = arith.constant 0 : index
    %c0_80 = arith.constant 0 : index
    %102 = vector.load %arg4[%c1_78, %c0_79, %c0_80] : memref<3x64x64xbf16, #tpu.memory_space<vmem>>, vector<1x64x64xbf16>
    %103 = vector.shape_cast %102 : vector<1x64x64xbf16> to vector<64x64xbf16>
    %cst_81 = arith.constant dense<0.000000e+00> : vector<4x64xf32>
    %104 = tpu.matmul %101, %103, %cst_81 {dimension_numbers = #tpu.dot_dimension_numbers<[1], [0], [0], [1], [0, 0, 1, 1], [], []>} : vector<4x64xbf16>, vector<64x64xbf16>, vector<4x64xf32> -> vector<4x64xf32>
    %105 = arith.addf %99, %104 : vector<4x64xf32>
    %c2_82 = arith.constant 2 : index
    %c0_83 = arith.constant 0 : index
    %106 = tpu.strided_load %arg9[%c2_82, %c0_83] {strides = array<i32: 2, 1>} : memref<48x64xf32, #tpu.memory_space<vmem>>, vector<4x64xf32>
    %107 = arith.truncf %106 : vector<4x64xf32> to vector<4x64xbf16>
    %c2_84 = arith.constant 2 : index
    %c0_85 = arith.constant 0 : index
    %c0_86 = arith.constant 0 : index
    %108 = vector.load %arg4[%c2_84, %c0_85, %c0_86] : memref<3x64x64xbf16, #tpu.memory_space<vmem>>, vector<1x64x64xbf16>
    %109 = vector.shape_cast %108 : vector<1x64x64xbf16> to vector<64x64xbf16>
    %cst_87 = arith.constant dense<0.000000e+00> : vector<4x64xf32>
    %110 = tpu.matmul %107, %109, %cst_87 {dimension_numbers = #tpu.dot_dimension_numbers<[1], [0], [0], [1], [0, 0, 1, 1], [], []>} : vector<4x64xbf16>, vector<64x64xbf16>, vector<4x64xf32> -> vector<4x64xf32>
    %111 = arith.addf %105, %110 : vector<4x64xf32>
    %112 = vector.broadcast %94 : vector<1x64xf32> to vector<4x64xf32>
    %113 = arith.addf %111, %112 : vector<4x64xf32>
    %cst_88 = arith.constant 5.000000e-01 : f32
    %114 = vector.broadcast %cst_88 : f32 to vector<4x64xf32>
    %115 = arith.mulf %114, %113 : vector<4x64xf32>
    %116 = arith.mulf %113, %113 : vector<4x64xf32>
    %117 = arith.mulf %116, %113 : vector<4x64xf32>
    %cst_89 = arith.constant 4.471500e-02 : f32
    %118 = vector.broadcast %cst_89 : f32 to vector<4x64xf32>
    %119 = arith.mulf %118, %117 : vector<4x64xf32>
    %120 = arith.addf %113, %119 : vector<4x64xf32>
    %cst_90 = arith.constant 0.797884583 : f32
    %121 = vector.broadcast %cst_90 : f32 to vector<4x64xf32>
    %122 = arith.mulf %121, %120 : vector<4x64xf32>
    %123 = math.tanh %122 : vector<4x64xf32>
    %cst_91 = arith.constant 1.000000e+00 : f32
    %124 = vector.broadcast %cst_91 : f32 to vector<4x64xf32>
    %125 = arith.addf %124, %123 : vector<4x64xf32>
    %126 = arith.mulf %115, %125 : vector<4x64xf32>
    %c24_92 = arith.constant 24 : index
    %c0_93 = arith.constant 0 : index
    %127 = tpu.strided_load %arg9[%c24_92, %c0_93] {strides = array<i32: 2, 1>} : memref<48x64xf32, #tpu.memory_space<vmem>>, vector<4x64xf32>
    %128 = arith.truncf %127 : vector<4x64xf32> to vector<4x64xbf16>
    %c0_94 = arith.constant 0 : index
    %c0_95 = arith.constant 0 : index
    %c0_96 = arith.constant 0 : index
    %129 = vector.load %arg4[%c0_94, %c0_95, %c0_96] : memref<3x64x64xbf16, #tpu.memory_space<vmem>>, vector<1x64x64xbf16>
    %130 = vector.shape_cast %129 : vector<1x64x64xbf16> to vector<64x64xbf16>
    %cst_97 = arith.constant dense<0.000000e+00> : vector<4x64xf32>
    %131 = tpu.matmul %128, %130, %cst_97 {dimension_numbers = #tpu.dot_dimension_numbers<[1], [0], [0], [1], [0, 0, 1, 1], [], []>} : vector<4x64xbf16>, vector<64x64xbf16>, vector<4x64xf32> -> vector<4x64xf32>
    %c25_98 = arith.constant 25 : index
    %c0_99 = arith.constant 0 : index
    %132 = tpu.strided_load %arg9[%c25_98, %c0_99] {strides = array<i32: 2, 1>} : memref<48x64xf32, #tpu.memory_space<vmem>>, vector<4x64xf32>
    %133 = arith.truncf %132 : vector<4x64xf32> to vector<4x64xbf16>
    %c1_100 = arith.constant 1 : index
    %c0_101 = arith.constant 0 : index
    %c0_102 = arith.constant 0 : index
    %134 = vector.load %arg4[%c1_100, %c0_101, %c0_102] : memref<3x64x64xbf16, #tpu.memory_space<vmem>>, vector<1x64x64xbf16>
    %135 = vector.shape_cast %134 : vector<1x64x64xbf16> to vector<64x64xbf16>
    %cst_103 = arith.constant dense<0.000000e+00> : vector<4x64xf32>
    %136 = tpu.matmul %133, %135, %cst_103 {dimension_numbers = #tpu.dot_dimension_numbers<[1], [0], [0], [1], [0, 0, 1, 1], [], []>} : vector<4x64xbf16>, vector<64x64xbf16>, vector<4x64xf32> -> vector<4x64xf32>
    %137 = arith.addf %131, %136 : vector<4x64xf32>
    %c26_104 = arith.constant 26 : index
    %c0_105 = arith.constant 0 : index
    %138 = tpu.strided_load %arg9[%c26_104, %c0_105] {strides = array<i32: 2, 1>} : memref<48x64xf32, #tpu.memory_space<vmem>>, vector<4x64xf32>
    %139 = arith.truncf %138 : vector<4x64xf32> to vector<4x64xbf16>
    %c2_106 = arith.constant 2 : index
    %c0_107 = arith.constant 0 : index
    %c0_108 = arith.constant 0 : index
    %140 = vector.load %arg4[%c2_106, %c0_107, %c0_108] : memref<3x64x64xbf16, #tpu.memory_space<vmem>>, vector<1x64x64xbf16>
    %141 = vector.shape_cast %140 : vector<1x64x64xbf16> to vector<64x64xbf16>
    %cst_109 = arith.constant dense<0.000000e+00> : vector<4x64xf32>
    %142 = tpu.matmul %139, %141, %cst_109 {dimension_numbers = #tpu.dot_dimension_numbers<[1], [0], [0], [1], [0, 0, 1, 1], [], []>} : vector<4x64xbf16>, vector<64x64xbf16>, vector<4x64xf32> -> vector<4x64xf32>
    %143 = arith.addf %137, %142 : vector<4x64xf32>
    %144 = vector.broadcast %94 : vector<1x64xf32> to vector<4x64xf32>
    %145 = arith.addf %143, %144 : vector<4x64xf32>
    %cst_110 = arith.constant 5.000000e-01 : f32
    %146 = vector.broadcast %cst_110 : f32 to vector<4x64xf32>
    %147 = arith.mulf %146, %145 : vector<4x64xf32>
    %148 = arith.mulf %145, %145 : vector<4x64xf32>
    %149 = arith.mulf %148, %145 : vector<4x64xf32>
    %cst_111 = arith.constant 4.471500e-02 : f32
    %150 = vector.broadcast %cst_111 : f32 to vector<4x64xf32>
    %151 = arith.mulf %150, %149 : vector<4x64xf32>
    %152 = arith.addf %145, %151 : vector<4x64xf32>
    %cst_112 = arith.constant 0.797884583 : f32
    %153 = vector.broadcast %cst_112 : f32 to vector<4x64xf32>
    %154 = arith.mulf %153, %152 : vector<4x64xf32>
    %155 = math.tanh %154 : vector<4x64xf32>
    %cst_113 = arith.constant 1.000000e+00 : f32
    %156 = vector.broadcast %cst_113 : f32 to vector<4x64xf32>
    %157 = arith.addf %156, %155 : vector<4x64xf32>
    %158 = arith.mulf %147, %157 : vector<4x64xf32>
    %cst_114 = arith.constant 0.000000e+00 : f32
    %159 = vector.broadcast %cst_114 : f32 to vector<1x64xf32>
    %c1_115 = arith.constant 1 : index
    %c0_116 = arith.constant 0 : index
    %160 = vector.load %arg9[%c1_115, %c0_116] : memref<48x64xf32, #tpu.memory_space<vmem>>, vector<4x64xf32>
    tpu.vector_store %arg9[%c1_115, %c0_116], %126 {strides = array<i32>} : memref<48x64xf32, #tpu.memory_space<vmem>>, vector<4x64xf32>,
    %c5 = arith.constant 5 : index
    %c0_117 = arith.constant 0 : index
    %161 = vector.load %arg9[%c5, %c0_117] : memref<48x64xf32, #tpu.memory_space<vmem>>, vector<1x64xf32>
    tpu.vector_store %arg9[%c5, %c0_117], %159 {strides = array<i32>} : memref<48x64xf32, #tpu.memory_space<vmem>>, vector<1x64xf32>,
    %c25_118 = arith.constant 25 : index
    %c0_119 = arith.constant 0 : index
    %162 = vector.load %arg9[%c25_118, %c0_119] : memref<48x64xf32, #tpu.memory_space<vmem>>, vector<4x64xf32>
    tpu.vector_store %arg9[%c25_118, %c0_119], %158 {strides = array<i32>} : memref<48x64xf32, #tpu.memory_space<vmem>>, vector<4x64xf32>,
    %c29 = arith.constant 29 : index
    %c0_120 = arith.constant 0 : index
    %163 = vector.load %arg9[%c29, %c0_120] : memref<48x64xf32, #tpu.memory_space<vmem>>, vector<1x64xf32>
    tpu.vector_store %arg9[%c29, %c0_120], %159 {strides = array<i32>} : memref<48x64xf32, #tpu.memory_space<vmem>>, vector<1x64xf32>,
    %c3 = arith.constant 3 : index
    %c0_121 = arith.constant 0 : index
    %164 = vector.load %arg6[%c3, %c0_121] : memref<4x64xf32, #tpu.memory_space<vmem>>, vector<1x64xf32>
    %c0_122 = arith.constant 0 : index
    %c0_123 = arith.constant 0 : index
    %165 = tpu.strided_load %arg9[%c0_122, %c0_123] {strides = array<i32: 2, 1>} : memref<48x64xf32, #tpu.memory_space<vmem>>, vector<2x64xf32>
    %166 = arith.truncf %165 : vector<2x64xf32> to vector<2x64xbf16>
    %c0_124 = arith.constant 0 : index
    %c0_125 = arith.constant 0 : index
    %c0_126 = arith.constant 0 : index
    %167 = vector.load %arg5[%c0_124, %c0_125, %c0_126] : memref<3x64x64xbf16, #tpu.memory_space<vmem>>, vector<1x64x64xbf16>
    %168 = vector.shape_cast %167 : vector<1x64x64xbf16> to vector<64x64xbf16>
    %cst_127 = arith.constant dense<0.000000e+00> : vector<2x64xf32>
    %169 = tpu.matmul %166, %168, %cst_127 {dimension_numbers = #tpu.dot_dimension_numbers<[1], [0], [0], [1], [0, 0, 1, 1], [], []>} : vector<2x64xbf16>, vector<64x64xbf16>, vector<2x64xf32> -> vector<2x64xf32>
    %c1_128 = arith.constant 1 : index
    %c0_129 = arith.constant 0 : index
    %170 = tpu.strided_load %arg9[%c1_128, %c0_129] {strides = array<i32: 2, 1>} : memref<48x64xf32, #tpu.memory_space<vmem>>, vector<2x64xf32>
    %171 = arith.truncf %170 : vector<2x64xf32> to vector<2x64xbf16>
    %c1_130 = arith.constant 1 : index
    %c0_131 = arith.constant 0 : index
    %c0_132 = arith.constant 0 : index
    %172 = vector.load %arg5[%c1_130, %c0_131, %c0_132] : memref<3x64x64xbf16, #tpu.memory_space<vmem>>, vector<1x64x64xbf16>
    %173 = vector.shape_cast %172 : vector<1x64x64xbf16> to vector<64x64xbf16>
    %cst_133 = arith.constant dense<0.000000e+00> : vector<2x64xf32>
    %174 = tpu.matmul %171, %173, %cst_133 {dimension_numbers = #tpu.dot_dimension_numbers<[1], [0], [0], [1], [0, 0, 1, 1], [], []>} : vector<2x64xbf16>, vector<64x64xbf16>, vector<2x64xf32> -> vector<2x64xf32>
    %175 = arith.addf %169, %174 : vector<2x64xf32>
    %c2_134 = arith.constant 2 : index
    %c0_135 = arith.constant 0 : index
    %176 = tpu.strided_load %arg9[%c2_134, %c0_135] {strides = array<i32: 2, 1>} : memref<48x64xf32, #tpu.memory_space<vmem>>, vector<2x64xf32>
    %177 = arith.truncf %176 : vector<2x64xf32> to vector<2x64xbf16>
    %c2_136 = arith.constant 2 : index
    %c0_137 = arith.constant 0 : index
    %c0_138 = arith.constant 0 : index
    %178 = vector.load %arg5[%c2_136, %c0_137, %c0_138] : memref<3x64x64xbf16, #tpu.memory_space<vmem>>, vector<1x64x64xbf16>
    %179 = vector.shape_cast %178 : vector<1x64x64xbf16> to vector<64x64xbf16>
    %cst_139 = arith.constant dense<0.000000e+00> : vector<2x64xf32>
    %180 = tpu.matmul %177, %179, %cst_139 {dimension_numbers = #tpu.dot_dimension_numbers<[1], [0], [0], [1], [0, 0, 1, 1], [], []>} : vector<2x64xbf16>, vector<64x64xbf16>, vector<2x64xf32> -> vector<2x64xf32>
    %181 = arith.addf %175, %180 : vector<2x64xf32>
    %182 = vector.broadcast %164 : vector<1x64xf32> to vector<2x64xf32>
    %183 = arith.addf %181, %182 : vector<2x64xf32>
    %c24_140 = arith.constant 24 : index
    %c0_141 = arith.constant 0 : index
    %184 = tpu.strided_load %arg9[%c24_140, %c0_141] {strides = array<i32: 2, 1>} : memref<48x64xf32, #tpu.memory_space<vmem>>, vector<2x64xf32>
    %185 = arith.truncf %184 : vector<2x64xf32> to vector<2x64xbf16>
    %c0_142 = arith.constant 0 : index
    %c0_143 = arith.constant 0 : index
    %c0_144 = arith.constant 0 : index
    %186 = vector.load %arg5[%c0_142, %c0_143, %c0_144] : memref<3x64x64xbf16, #tpu.memory_space<vmem>>, vector<1x64x64xbf16>
    %187 = vector.shape_cast %186 : vector<1x64x64xbf16> to vector<64x64xbf16>
    %cst_145 = arith.constant dense<0.000000e+00> : vector<2x64xf32>
    %188 = tpu.matmul %185, %187, %cst_145 {dimension_numbers = #tpu.dot_dimension_numbers<[1], [0], [0], [1], [0, 0, 1, 1], [], []>} : vector<2x64xbf16>, vector<64x64xbf16>, vector<2x64xf32> -> vector<2x64xf32>
    %c25_146 = arith.constant 25 : index
    %c0_147 = arith.constant 0 : index
    %189 = tpu.strided_load %arg9[%c25_146, %c0_147] {strides = array<i32: 2, 1>} : memref<48x64xf32, #tpu.memory_space<vmem>>, vector<2x64xf32>
    %190 = arith.truncf %189 : vector<2x64xf32> to vector<2x64xbf16>
    %c1_148 = arith.constant 1 : index
    %c0_149 = arith.constant 0 : index
    %c0_150 = arith.constant 0 : index
    %191 = vector.load %arg5[%c1_148, %c0_149, %c0_150] : memref<3x64x64xbf16, #tpu.memory_space<vmem>>, vector<1x64x64xbf16>
    %192 = vector.shape_cast %191 : vector<1x64x64xbf16> to vector<64x64xbf16>
    %cst_151 = arith.constant dense<0.000000e+00> : vector<2x64xf32>
    %193 = tpu.matmul %190, %192, %cst_151 {dimension_numbers = #tpu.dot_dimension_numbers<[1], [0], [0], [1], [0, 0, 1, 1], [], []>} : vector<2x64xbf16>, vector<64x64xbf16>, vector<2x64xf32> -> vector<2x64xf32>
    %194 = arith.addf %188, %193 : vector<2x64xf32>
    %c26_152 = arith.constant 26 : index
    %c0_153 = arith.constant 0 : index
    %195 = tpu.strided_load %arg9[%c26_152, %c0_153] {strides = array<i32: 2, 1>} : memref<48x64xf32, #tpu.memory_space<vmem>>, vector<2x64xf32>
    %196 = arith.truncf %195 : vector<2x64xf32> to vector<2x64xbf16>
    %c2_154 = arith.constant 2 : index
    %c0_155 = arith.constant 0 : index
    %c0_156 = arith.constant 0 : index
    %197 = vector.load %arg5[%c2_154, %c0_155, %c0_156] : memref<3x64x64xbf16, #tpu.memory_space<vmem>>, vector<1x64x64xbf16>
    %198 = vector.shape_cast %197 : vector<1x64x64xbf16> to vector<64x64xbf16>
    %cst_157 = arith.constant dense<0.000000e+00> : vector<2x64xf32>
    %199 = tpu.matmul %196, %198, %cst_157 {dimension_numbers = #tpu.dot_dimension_numbers<[1], [0], [0], [1], [0, 0, 1, 1], [], []>} : vector<2x64xbf16>, vector<64x64xbf16>, vector<2x64xf32> -> vector<2x64xf32>
    %200 = arith.addf %194, %199 : vector<2x64xf32>
    %201 = vector.broadcast %164 : vector<1x64xf32> to vector<2x64xf32>
    %202 = arith.addf %200, %201 : vector<2x64xf32>
    %203 = arith.truncf %183 : vector<2x64xf32> to vector<2x64xbf16>
    %c0_158 = arith.constant 0 : index
    %c0_159 = arith.constant 0 : index
    %c0_160 = arith.constant 0 : index
    %204 = vector.load %arg7[%c0_158, %c0_159, %c0_160] : memref<2x64x32xbf16, #tpu.memory_space<vmem>>, vector<1x64x32xbf16>
    %205 = vector.shape_cast %204 : vector<1x64x32xbf16> to vector<64x32xbf16>
    %cst_161 = arith.constant dense<0.000000e+00> : vector<2x32xf32>
    %206 = tpu.matmul %203, %205, %cst_161 {dimension_numbers = #tpu.dot_dimension_numbers<[1], [0], [0], [1], [0, 0, 1, 1], [], []>} : vector<2x64xbf16>, vector<64x32xbf16>, vector<2x32xf32> -> vector<2x32xf32>
    %c1_162 = arith.constant 1 : index
    %c0_163 = arith.constant 0 : index
    %c0_164 = arith.constant 0 : index
    %207 = vector.load %arg7[%c1_162, %c0_163, %c0_164] : memref<2x64x32xbf16, #tpu.memory_space<vmem>>, vector<1x64x32xbf16>
    %208 = vector.shape_cast %207 : vector<1x64x32xbf16> to vector<64x32xbf16>
    %cst_165 = arith.constant dense<0.000000e+00> : vector<2x32xf32>
    %209 = tpu.matmul %203, %208, %cst_165 {dimension_numbers = #tpu.dot_dimension_numbers<[1], [0], [0], [1], [0, 0, 1, 1], [], []>} : vector<2x64xbf16>, vector<64x32xbf16>, vector<2x32xf32> -> vector<2x32xf32>
    %210 = vector.extract_strided_slice %206 {offsets = [0, 0], sizes = [2, 16], strides = [1, 1]} : vector<2x32xf32> to vector<2x16xf32>
    %cst_166 = arith.constant dense<0xFF800000> : vector<16xf32>
    %211 = vector.multi_reduction <maximumf>, %210, %cst_166 [0] : vector<2x16xf32> to vector<16xf32>
    %212 = vector.shape_cast %211 : vector<16xf32> to vector<1x16xf32>
    %213 = vector.extract_strided_slice %209 {offsets = [0, 0], sizes = [2, 16], strides = [1, 1]} : vector<2x32xf32> to vector<2x16xf32>
    %cst_167 = arith.constant dense<0xFF800000> : vector<16xf32>
    %214 = vector.multi_reduction <maximumf>, %213, %cst_167 [0] : vector<2x16xf32> to vector<16xf32>
    %215 = vector.shape_cast %214 : vector<16xf32> to vector<1x16xf32>
    %216 = arith.maximumf %212, %215 : vector<1x16xf32>
    %217 = vector.extract_strided_slice %206 {offsets = [0, 0], sizes = [2, 16], strides = [1, 1]} : vector<2x32xf32> to vector<2x16xf32>
    %218 = vector.broadcast %216 : vector<1x16xf32> to vector<2x16xf32>
    %219 = arith.subf %217, %218 : vector<2x16xf32>
    %220 = math.exp %219 : vector<2x16xf32>
    %221 = vector.extract_strided_slice %206 {offsets = [0, 16], sizes = [2, 1], strides = [1, 1]} : vector<2x32xf32> to vector<2x1xf32>
    %cst_168 = arith.constant dense<0.000000e+00> : vector<16xf32>
    %222 = vector.multi_reduction <add>, %220, %cst_168 [0] : vector<2x16xf32> to vector<16xf32>
    %223 = vector.shape_cast %222 : vector<16xf32> to vector<1x16xf32>
    %224 = vector.broadcast %221 : vector<2x1xf32> to vector<2x16xf32>
    %225 = arith.mulf %220, %224 : vector<2x16xf32>
    %cst_169 = arith.constant dense<0.000000e+00> : vector<16xf32>
    %226 = vector.multi_reduction <add>, %225, %cst_169 [0] : vector<2x16xf32> to vector<16xf32>
    %227 = vector.shape_cast %226 : vector<16xf32> to vector<1x16xf32>
    %228 = vector.extract_strided_slice %209 {offsets = [0, 0], sizes = [2, 16], strides = [1, 1]} : vector<2x32xf32> to vector<2x16xf32>
    %229 = vector.broadcast %216 : vector<1x16xf32> to vector<2x16xf32>
    %230 = arith.subf %228, %229 : vector<2x16xf32>
    %231 = math.exp %230 : vector<2x16xf32>
    %232 = vector.extract_strided_slice %209 {offsets = [0, 16], sizes = [2, 1], strides = [1, 1]} : vector<2x32xf32> to vector<2x1xf32>
    %cst_170 = arith.constant dense<0.000000e+00> : vector<16xf32>
    %233 = vector.multi_reduction <add>, %231, %cst_170 [0] : vector<2x16xf32> to vector<16xf32>
    %234 = vector.shape_cast %233 : vector<16xf32> to vector<1x16xf32>
    %235 = vector.broadcast %232 : vector<2x1xf32> to vector<2x16xf32>
    %236 = arith.mulf %231, %235 : vector<2x16xf32>
    %cst_171 = arith.constant dense<0.000000e+00> : vector<16xf32>
    %237 = vector.multi_reduction <add>, %236, %cst_171 [0] : vector<2x16xf32> to vector<16xf32>
    %238 = vector.shape_cast %237 : vector<16xf32> to vector<1x16xf32>
    %239 = arith.addf %223, %234 : vector<1x16xf32>
    %240 = arith.addf %227, %238 : vector<1x16xf32>
    %241 = tpu.reciprocal %239 {approx = true} : vector<1x16xf32> -> vector<1x16xf32>
    %242 = arith.mulf %240, %241 : vector<1x16xf32>
    %c0_172 = arith.constant 0 : index
    %c0_173 = arith.constant 0 : index
    %c0_174 = arith.constant 0 : index
    %243 = vector.load %arg8[%c0_172, %c0_173, %c0_174] : memref<2x1x16xf32, #tpu.memory_space<vmem>>, vector<1x1x16xf32>
    %244 = vector.shape_cast %243 : vector<1x1x16xf32> to vector<1x16xf32>
    %245 = vector.shape_cast %242 : vector<1x16xf32> to vector<1x1x16xf32>
    tpu.vector_store %arg8[%c0_172, %c0_173, %c0_174], %245 {strides = array<i32>} : memref<2x1x16xf32, #tpu.memory_space<vmem>>, vector<1x1x16xf32>,
    %246 = arith.truncf %202 : vector<2x64xf32> to vector<2x64xbf16>
    %c0_175 = arith.constant 0 : index
    %c0_176 = arith.constant 0 : index
    %c0_177 = arith.constant 0 : index
    %247 = vector.load %arg7[%c0_175, %c0_176, %c0_177] : memref<2x64x32xbf16, #tpu.memory_space<vmem>>, vector<1x64x32xbf16>
    %248 = vector.shape_cast %247 : vector<1x64x32xbf16> to vector<64x32xbf16>
    %cst_178 = arith.constant dense<0.000000e+00> : vector<2x32xf32>
    %249 = tpu.matmul %246, %248, %cst_178 {dimension_numbers = #tpu.dot_dimension_numbers<[1], [0], [0], [1], [0, 0, 1, 1], [], []>} : vector<2x64xbf16>, vector<64x32xbf16>, vector<2x32xf32> -> vector<2x32xf32>
    %c1_179 = arith.constant 1 : index
    %c0_180 = arith.constant 0 : index
    %c0_181 = arith.constant 0 : index
    %250 = vector.load %arg7[%c1_179, %c0_180, %c0_181] : memref<2x64x32xbf16, #tpu.memory_space<vmem>>, vector<1x64x32xbf16>
    %251 = vector.shape_cast %250 : vector<1x64x32xbf16> to vector<64x32xbf16>
    %cst_182 = arith.constant dense<0.000000e+00> : vector<2x32xf32>
    %252 = tpu.matmul %246, %251, %cst_182 {dimension_numbers = #tpu.dot_dimension_numbers<[1], [0], [0], [1], [0, 0, 1, 1], [], []>} : vector<2x64xbf16>, vector<64x32xbf16>, vector<2x32xf32> -> vector<2x32xf32>
    %253 = vector.extract_strided_slice %249 {offsets = [0, 0], sizes = [2, 16], strides = [1, 1]} : vector<2x32xf32> to vector<2x16xf32>
    %cst_183 = arith.constant dense<0xFF800000> : vector<16xf32>
    %254 = vector.multi_reduction <maximumf>, %253, %cst_183 [0] : vector<2x16xf32> to vector<16xf32>
    %255 = vector.shape_cast %254 : vector<16xf32> to vector<1x16xf32>
    %256 = vector.extract_strided_slice %252 {offsets = [0, 0], sizes = [2, 16], strides = [1, 1]} : vector<2x32xf32> to vector<2x16xf32>
    %cst_184 = arith.constant dense<0xFF800000> : vector<16xf32>
    %257 = vector.multi_reduction <maximumf>, %256, %cst_184 [0] : vector<2x16xf32> to vector<16xf32>
    %258 = vector.shape_cast %257 : vector<16xf32> to vector<1x16xf32>
    %259 = arith.maximumf %255, %258 : vector<1x16xf32>
    %260 = vector.extract_strided_slice %249 {offsets = [0, 0], sizes = [2, 16], strides = [1, 1]} : vector<2x32xf32> to vector<2x16xf32>
    %261 = vector.broadcast %259 : vector<1x16xf32> to vector<2x16xf32>
    %262 = arith.subf %260, %261 : vector<2x16xf32>
    %263 = math.exp %262 : vector<2x16xf32>
    %264 = vector.extract_strided_slice %249 {offsets = [0, 16], sizes = [2, 1], strides = [1, 1]} : vector<2x32xf32> to vector<2x1xf32>
    %cst_185 = arith.constant dense<0.000000e+00> : vector<16xf32>
    %265 = vector.multi_reduction <add>, %263, %cst_185 [0] : vector<2x16xf32> to vector<16xf32>
    %266 = vector.shape_cast %265 : vector<16xf32> to vector<1x16xf32>
    %267 = vector.broadcast %264 : vector<2x1xf32> to vector<2x16xf32>
    %268 = arith.mulf %263, %267 : vector<2x16xf32>
    %cst_186 = arith.constant dense<0.000000e+00> : vector<16xf32>
    %269 = vector.multi_reduction <add>, %268, %cst_186 [0] : vector<2x16xf32> to vector<16xf32>
    %270 = vector.shape_cast %269 : vector<16xf32> to vector<1x16xf32>
    %271 = vector.extract_strided_slice %252 {offsets = [0, 0], sizes = [2, 16], strides = [1, 1]} : vector<2x32xf32> to vector<2x16xf32>
    %272 = vector.broadcast %259 : vector<1x16xf32> to vector<2x16xf32>
    %273 = arith.subf %271, %272 : vector<2x16xf32>
    %274 = math.exp %273 : vector<2x16xf32>
    %275 = vector.extract_strided_slice %252 {offsets = [0, 16], sizes = [2, 1], strides = [1, 1]} : vector<2x32xf32> to vector<2x1xf32>
    %cst_187 = arith.constant dense<0.000000e+00> : vector<16xf32>
    %276 = vector.multi_reduction <add>, %274, %cst_187 [0] : vector<2x16xf32> to vector<16xf32>
    %277 = vector.shape_cast %276 : vector<16xf32> to vector<1x16xf32>
    %278 = vector.broadcast %275 : vector<2x1xf32> to vector<2x16xf32>
    %279 = arith.mulf %274, %278 : vector<2x16xf32>
    %cst_188 = arith.constant dense<0.000000e+00> : vector<16xf32>
    %280 = vector.multi_reduction <add>, %279, %cst_188 [0] : vector<2x16xf32> to vector<16xf32>
    %281 = vector.shape_cast %280 : vector<16xf32> to vector<1x16xf32>
    %282 = arith.addf %266, %277 : vector<1x16xf32>
    %283 = arith.addf %270, %281 : vector<1x16xf32>
    %284 = tpu.reciprocal %282 {approx = true} : vector<1x16xf32> -> vector<1x16xf32>
    %285 = arith.mulf %283, %284 : vector<1x16xf32>
    %c1_189 = arith.constant 1 : index
    %c0_190 = arith.constant 0 : index
    %c0_191 = arith.constant 0 : index
    %286 = vector.load %arg8[%c1_189, %c0_190, %c0_191] : memref<2x1x16xf32, #tpu.memory_space<vmem>>, vector<1x1x16xf32>
    %287 = vector.shape_cast %286 : vector<1x1x16xf32> to vector<1x16xf32>
    %288 = vector.shape_cast %285 : vector<1x16xf32> to vector<1x1x16xf32>
    tpu.vector_store %arg8[%c1_189, %c0_190, %c0_191], %288 {strides = array<i32>} : memref<2x1x16xf32, #tpu.memory_space<vmem>>, vector<1x1x16xf32>,
    return
  }
  func.func @transform_0(%arg0: i32) -> (i32, i32) {
    %c0_i32 = arith.constant 0 : i32
    %c0_i32_0 = arith.constant 0 : i32
    return %arg0, %c0_i32 : i32, i32
  }
  func.func @transform_1(%arg0: i32) -> (i32, i32, i32) {
    %c0_i32 = arith.constant 0 : i32
    %c0_i32_0 = arith.constant 0 : i32
    %c0_i32_1 = arith.constant 0 : i32
    %c0_i32_2 = arith.constant 0 : i32
    return %c0_i32, %c0_i32_0, %c0_i32_1 : i32, i32, i32
  }
  func.func @transform_2(%arg0: i32) -> (i32, i32, i32) {
    %c0_i32 = arith.constant 0 : i32
    %c0_i32_0 = arith.constant 0 : i32
    %c0_i32_1 = arith.constant 0 : i32
    %c0_i32_2 = arith.constant 0 : i32
    return %c0_i32, %c0_i32_0, %c0_i32_1 : i32, i32, i32
  }
  func.func @transform_3(%arg0: i32) -> (i32, i32, i32) {
    %c0_i32 = arith.constant 0 : i32
    %c0_i32_0 = arith.constant 0 : i32
    %c0_i32_1 = arith.constant 0 : i32
    %c0_i32_2 = arith.constant 0 : i32
    return %c0_i32, %c0_i32_0, %c0_i32_1 : i32, i32, i32
  }
  func.func @transform_4(%arg0: i32) -> (i32, i32, i32) {
    %c0_i32 = arith.constant 0 : i32
    %c0_i32_0 = arith.constant 0 : i32
    %c0_i32_1 = arith.constant 0 : i32
    %c0_i32_2 = arith.constant 0 : i32
    return %c0_i32, %c0_i32_0, %c0_i32_1 : i32, i32, i32
  }
  func.func @transform_5(%arg0: i32) -> (i32, i32) {
    %c0_i32 = arith.constant 0 : i32
    %c0_i32_0 = arith.constant 0 : i32
    %c0_i32_1 = arith.constant 0 : i32
    return %c0_i32, %c0_i32_0 : i32, i32
  }
  func.func @transform_6(%arg0: i32) -> (i32, i32, i32) {
    %c0_i32 = arith.constant 0 : i32
    %c0_i32_0 = arith.constant 0 : i32
    %c0_i32_1 = arith.constant 0 : i32
    %c0_i32_2 = arith.constant 0 : i32
    return %c0_i32, %c0_i32_0, %c0_i32_1 : i32, i32, i32
  }
  func.func @transform_7(%arg0: i32) -> (i32, i32, i32) {
    %c0_i32 = arith.constant 0 : i32
    %c0_i32_0 = arith.constant 0 : i32
    %c0_i32_1 = arith.constant 0 : i32
    return %arg0, %c0_i32, %c0_i32_0 : i32, i32, i32
  }
}

</mosaic_0001>

<llo_original>
// kernel: tile.38
$region0: #{tile.38}
  #allocation0 [shape = 's32[1]{0}', space=sflag, size = 0x4, scoped, tag = 'scoped memory for tile.38']
  %s0 = inlined_call_operand.vmem [shape: f32[32], index: 0, kind: input, shape index: {}]
  %s1 = inlined_call_operand.vmem [shape: f32[2,32], index: 1, kind: output, shape index: {}]
  // Predicated region
  $region2: #{tile.38} parent=0 // pred_check
    _
  $region3: #{tile.38} parent=0 // pred_check_branch
    %3 = sbr.rel (0) target = $region5
  $region4: #{tile.38} parent=0 // pred_region
    _
  $region5: #{tile.38} parent=0 // pred_fallthru
    _
  %v4 = vld [vmem:[%s0] ss:$0 sm:$0xff]
  %5 = vst [vmem:[%s1] sm:$0x3] %v4

// kernel: tile.33
$region0: #{tile.33}
  #allocation0 [shape = 's32[1]{0}', space=sflag, size = 0x4, scoped, tag = 'scoped memory for tile.33']
  %s0 = inlined_call_operand.vmem [shape: f32[16], index: 0, kind: input, shape index: {}]
  %s1 = inlined_call_operand.vmem [shape: f32[4,16], index: 1, kind: output, shape index: {}]
  // Predicated region
  $region2: #{tile.33} parent=0 // pred_check
    _
  $region3: #{tile.33} parent=0 // pred_check_branch
    %3 = sbr.rel (0) target = $region5
  $region4: #{tile.33} parent=0 // pred_region
    _
  $region5: #{tile.33} parent=0 // pred_fallthru
    _
  %v4 = vld [vmem:[%s0] ss:$0 sm:$0xff]
  %5 = vst [vmem:[%s1] sm:$0xf] %v4

// kernel: tile.28
$region0: #{tile.28}
  #allocation0 [shape = 's32[1]{0}', space=sflag, size = 0x4, scoped, tag = 'scoped memory for tile.28']
  %s0 = inlined_call_operand.vmem [shape: f32[8], index: 0, kind: input, shape index: {}]
  %s1 = inlined_call_operand.vmem [shape: f32[8,8], index: 1, kind: output, shape index: {}]
  // Predicated region
  $region2: #{tile.28} parent=0 // pred_check
    _
  $region3: #{tile.28} parent=0 // pred_check_branch
    %3 = sbr.rel (0) target = $region5
  $region4: #{tile.28} parent=0 // pred_region
    _
  $region5: #{tile.28} parent=0 // pred_fallthru
    _
  %v4 = vld [vmem:[%s0] ss:$0 sm:$0xff]
  %5 = vst [vmem:[%s1] sm:$0xff] %v4

// kernel: tile.23
$region0: #{tile.23}
  #allocation0 [shape = 's32[1]{0}', space=sflag, size = 0x4, scoped, tag = 'scoped memory for tile.23']
  %s0 = inlined_call_operand.vmem [shape: f32[4], index: 0, kind: input, shape index: {}]
  %s1 = inlined_call_operand.vmem [shape: f32[16,4], index: 1, kind: output, shape index: {}]
  // Predicated region
  $region2: #{tile.23} parent=0 // pred_check
    _
  $region3: #{tile.23} parent=0 // pred_check_branch
    %3 = sbr.rel (0) target = $region5
  $region4: #{tile.23} parent=0 // pred_region
    _
  $region5: #{tile.23} parent=0 // pred_fallthru
    _
  %v4 = vld [vmem:[%s0] ss:$0 sm:$0xff]
  %5 = vst [vmem:[%s1] sm:$0xff] %v4
  %s6 = scalar_lea.vmem %s1, 8
  %7 = vst [vmem:[%s6] sm:$0xff] %v4

// kernel: _lambda_.1
$region0: #{_lambda_.1}
  #allocation0 [shape = 'u32[]', space=smem, size = 0x4, offset = 0x4, fixed_abs, tag = 'smem constant byte address 0x4 - core index']
  #allocation1 [shape = 'u32[144,128]{1,0:T(1,128)}', space=vmem, size = 0x12000, scoped, tag = 'internal scratch']
  #allocation2 [shape = 'f32[48,64]{1,0:T(8,128)}', space=vmem, size = 0x6000, scoped, tag = 'scratch operand']
  %s0 = inlined_call_operand.vmem [shape: f32[160,96], index: 0, kind: input, shape index: {}]
  %s1 = inlined_call_operand.vmem [shape: bf16[3,96,64], index: 1, kind: input, shape index: {}]
  %s2 = inlined_call_operand.vmem [shape: bf16[3,64,64], index: 2, kind: input, shape index: {}]
  %s3 = inlined_call_operand.vmem [shape: bf16[3,64,64], index: 3, kind: input, shape index: {}]
  %s4 = inlined_call_operand.vmem [shape: bf16[3,64,64], index: 4, kind: input, shape index: {}]
  %s5 = inlined_call_operand.vmem [shape: f32[4,64], index: 5, kind: input, shape index: {}]
  %s6 = inlined_call_operand.vmem [shape: bf16[2,64,32], index: 6, kind: input, shape index: {}]
  %s7 = inlined_call_operand.vmem [shape: f32[4,1,16], index: 7, kind: output, shape index: {}]
  %s8 = sld [smem:[#allocation0]]
  $region61: #{_lambda_.1} parent=0
    _
  %s10 = ssub.s32 1, %s8
  %s11 = scalar_select 0, %s10, %s8
  loop: start=0, step=1, limit=4
  $region2: #{_lambda_.1} parent=0 // loop_pre_header
    _
  $region3: #{_lambda_.1} parent=0 // loop_header
    %s13 = sphi 0, %s17
    %p14 = scmp.ge.s32.totalorder %s13, 4
    %s23 = sphi 0, %s25
    %s26 = sphi 0, %s23
    %s27 = sphi 0, %s26
    %s43 = sphi 0, %s27
    %s47 = sphi 0, %s47
    %s49 = sphi 0, %s47
    %s50 = sphi 0, %s49
    %s64 = sphi 0, %s50
    %s68 = sphi 0, %s68
    %s70 = sphi 0, %s68
    %s71 = sphi 0, %s70
    %s85 = sphi 0, %s71
    %s89 = sphi 0, %s89
    %s91 = sphi 0, %s89
    %s92 = sphi 0, %s91
    %s106 = sphi 0, %s92
    %s110 = sphi 0, %s110
    %s112 = sphi 0, %s110
    %s113 = sphi 0, %s112
    %s127 = sphi 0, %s113
    %s131 = sphi 0, %s131
    %s133 = sphi 0, %s131
    %s134 = sphi 0, %s133
    %s148 = sphi 0, %s134
    %s152 = sphi 0, %s152
    %s154 = sphi 0, %s152
    %s155 = sphi 0, %s154
    %s169 = sphi 0, %s155
    %s175 = sphi 0, %s177
    %s178 = sphi 0, %s175
    %s179 = sphi 0, %s178
    %s195 = sphi 0, %s179
  $region4: #{_lambda_.1} parent=0 // loop_header_branch
    %16 = sbr.rel (%p14) target = $region8
  $region5: #{_lambda_.1} parent=0 // loop_body
    %s18 = ssub.s32 %s13, 1
    %s19 = ssub.s32 %s13, 2
    %s20 = sadd.s32 %s13, 1
    %s21 = ssub.s32 %s13, %s20
    %p22 = scmp.eq.s32.totalorder %s21, 0
    %s24 = sadd.s32 %s23, 1
    %s25 = scalar_select %p22, %s23, %s24
    %p28 = pneg %p22
    %p29 = scmp.eq.s32.totalorder %s13, 1
    %p30 = por %p28, %p29
    %p31 = scmp.ne.s32.totalorder %s23, %s26
    %p32 = scmp.eq.s32.totalorder %s13, 0
    %p33 = por %p31, %p32
    %p34 = scmp.ne.s32.totalorder %s23, %s26
    %p35 = scmp.eq.s32.totalorder %s18, 1
    %p36 = por %p34, %p35
    %p37 = scmp.ne.s32.totalorder %s26, %s27
    %p38 = scmp.eq.s32.totalorder %s18, 0
    %p39 = por %p37, %p38
    %p40 = scmp.ne.s32.totalorder %s26, %s27
    %p41 = scmp.eq.s32.totalorder %s19, 1
    %p42 = por %p40, %p41
    %p44 = scmp.ne.s32.totalorder %s27, %s43
    %p45 = scmp.eq.s32.totalorder %s19, 0
    %p46 = por %p44, %p45
    %s48 = sadd.s32 %s47, 1
    %p51 = scmp.eq.s32.totalorder %s13, 1
    %p52 = scmp.ne.s32.totalorder %s47, %s49
    %p53 = scmp.eq.s32.totalorder %s13, 0
    %p54 = por %p52, %p53
    %p55 = scmp.ne.s32.totalorder %s47, %s49
    %p56 = scmp.eq.s32.totalorder %s18, 1
    %p57 = por %p55, %p56
    %p58 = scmp.ne.s32.totalorder %s49, %s50
    %p59 = scmp.eq.s32.totalorder %s18, 0
    %p60 = por %p58, %p59
    %p61 = scmp.ne.s32.totalorder %s49, %s50
    %p62 = scmp.eq.s32.totalorder %s19, 1
    %p63 = por %p61, %p62
    %p65 = scmp.ne.s32.totalorder %s50, %s64
    %p66 = scmp.eq.s32.totalorder %s19, 0
    %p67 = por %p65, %p66
    %s69 = sadd.s32 %s68, 1
    %p72 = scmp.eq.s32.totalorder %s13, 1
    %p73 = scmp.ne.s32.totalorder %s68, %s70
    %p74 = scmp.eq.s32.totalorder %s13, 0
    %p75 = por %p73, %p74
    %p76 = scmp.ne.s32.totalorder %s68, %s70
    %p77 = scmp.eq.s32.totalorder %s18, 1
    %p78 = por %p76, %p77
    %p79 = scmp.ne.s32.totalorder %s70, %s71
    %p80 = scmp.eq.s32.totalorder %s18, 0
    %p81 = por %p79, %p80
    %p82 = scmp.ne.s32.totalorder %s70, %s71
    %p83 = scmp.eq.s32.totalorder %s19, 1
    %p84 = por %p82, %p83
    %p86 = scmp.ne.s32.totalorder %s71, %s85
    %p87 = scmp.eq.s32.totalorder %s19, 0
    %p88 = por %p86, %p87
    %s90 = sadd.s32 %s89, 1
    %p93 = scmp.eq.s32.totalorder %s13, 1
    %p94 = scmp.ne.s32.totalorder %s89, %s91
    %p95 = scmp.eq.s32.totalorder %s13, 0
    %p96 = por %p94, %p95
    %p97 = scmp.ne.s32.totalorder %s89, %s91
    %p98 = scmp.eq.s32.totalorder %s18, 1
    %p99 = por %p97, %p98
    %p100 = scmp.ne.s32.totalorder %s91, %s92
    %p101 = scmp.eq.s32.totalorder %s18, 0
    %p102 = por %p100, %p101
    %p103 = scmp.ne.s32.totalorder %s91, %s92
    %p104 = scmp.eq.s32.totalorder %s19, 1
    %p105 = por %p103, %p104
    %p107 = scmp.ne.s32.totalorder %s92, %s106
    %p108 = scmp.eq.s32.totalorder %s19, 0
    %p109 = por %p107, %p108
    %s111 = sadd.s32 %s110, 1
    %p114 = scmp.eq.s32.totalorder %s13, 1
    %p115 = scmp.ne.s32.totalorder %s110, %s112
    %p116 = scmp.eq.s32.totalorder %s13, 0
    %p117 = por %p115, %p116
    %p118 = scmp.ne.s32.totalorder %s110, %s112
    %p119 = scmp.eq.s32.totalorder %s18, 1
    %p120 = por %p118, %p119
    %p121 = scmp.ne.s32.totalorder %s112, %s113
    %p122 = scmp.eq.s32.totalorder %s18, 0
    %p123 = por %p121, %p122
    %p124 = scmp.ne.s32.totalorder %s112, %s113
    %p125 = scmp.eq.s32.totalorder %s19, 1
    %p126 = por %p124, %p125
    %p128 = scmp.ne.s32.totalorder %s113, %s127
    %p129 = scmp.eq.s32.totalorder %s19, 0
    %p130 = por %p128, %p129
    %s132 = sadd.s32 %s131, 1
    %p135 = scmp.eq.s32.totalorder %s13, 1
    %p136 = scmp.ne.s32.totalorder %s131, %s133
    %p137 = scmp.eq.s32.totalorder %s13, 0
    %p138 = por %p136, %p137
    %p139 = scmp.ne.s32.totalorder %s131, %s133
    %p140 = scmp.eq.s32.totalorder %s18, 1
    %p141 = por %p139, %p140
    %p142 = scmp.ne.s32.totalorder %s133, %s134
    %p143 = scmp.eq.s32.totalorder %s18, 0
    %p144 = por %p142, %p143
    %p145 = scmp.ne.s32.totalorder %s133, %s134
    %p146 = scmp.eq.s32.totalorder %s19, 1
    %p147 = por %p145, %p146
    %p149 = scmp.ne.s32.totalorder %s134, %s148
    %p150 = scmp.eq.s32.totalorder %s19, 0
    %p151 = por %p149, %p150
    %s153 = sadd.s32 %s152, 1
    %p156 = scmp.eq.s32.totalorder %s13, 1
    %p157 = scmp.ne.s32.totalorder %s152, %s154
    %p158 = scmp.eq.s32.totalorder %s13, 0
    %p159 = por %p157, %p158
    %p160 = scmp.ne.s32.totalorder %s152, %s154
    %p161 = scmp.eq.s32.totalorder %s18, 1
    %p162 = por %p160, %p161
    %p163 = scmp.ne.s32.totalorder %s154, %s155
    %p164 = scmp.eq.s32.totalorder %s18, 0
    %p165 = por %p163, %p164
    %p166 = scmp.ne.s32.totalorder %s154, %s155
    %p167 = scmp.eq.s32.totalorder %s19, 1
    %p168 = por %p166, %p167
    %p170 = scmp.ne.s32.totalorder %s155, %s169
    %p171 = scmp.eq.s32.totalorder %s19, 0
    %p172 = por %p170, %p171
    %s173 = ssub.s32 %s13, %s20
    %p174 = scmp.eq.s32.totalorder %s173, 0
    %s176 = sadd.s32 %s175, 1
    %s177 = scalar_select %p174, %s175, %s176
    %p180 = pneg %p174
    %p181 = scmp.eq.s32.totalorder %s13, 1
    %p182 = por %p180, %p181
    %p183 = scmp.ne.s32.totalorder %s175, %s178
    %p184 = scmp.eq.s32.totalorder %s13, 0
    %p185 = por %p183, %p184
    %p186 = scmp.ne.s32.totalorder %s175, %s178
    %p187 = scmp.eq.s32.totalorder %s18, 1
    %p188 = por %p186, %p187
    %p189 = scmp.ne.s32.totalorder %s178, %s179
    %p190 = scmp.eq.s32.totalorder %s18, 0
    %p191 = por %p189, %p190
    %p192 = scmp.ne.s32.totalorder %s178, %s179
    %p193 = scmp.eq.s32.totalorder %s19, 1
    %p194 = por %p192, %p193
    %p196 = scmp.ne.s32.totalorder %s179, %s195
    %p197 = scmp.eq.s32.totalorder %s19, 0
    %p198 = por %p196, %p197
    %p199 = scmp.le.s32.totalorder 1, %s13
    %p200 = scmp.lt.s32.totalorder %s13, 3
    %p201 = pnand %p199, %p200
    %p202 = pneg %p201
    // Predicated region
    $region9: #{_lambda_.1} parent=5 // pred_check
      _
    $region10: #{_lambda_.1} parent=5 // pred_check_branch
      %204 = sbr.rel (%p201) target = $region12
    $region11: #{_lambda_.1} parent=5 // pred_region
      %s205 = ssub.s32 %s13, 1
      // Predicated region
      $region13: #{_lambda_.1} parent=11 // pred_check
        %p206 = pneg %p60
      $region14: #{_lambda_.1} parent=11 // pred_check_branch
        %208 = sbr.rel (%p206) target = $region16
      $region15: #{_lambda_.1} parent=11 // pred_region
        _
      $region16: #{_lambda_.1} parent=11 // pred_fallthru
        _
      // Predicated region
      $region17: #{_lambda_.1} parent=11 // pred_check
        %p209 = pneg %p81
      $region18: #{_lambda_.1} parent=11 // pred_check_branch
        %211 = sbr.rel (%p209) target = $region20
      $region19: #{_lambda_.1} parent=11 // pred_region
        _
      $region20: #{_lambda_.1} parent=11 // pred_fallthru
        _
      // Predicated region
      $region21: #{_lambda_.1} parent=11 // pred_check
        %p212 = pneg %p102
      $region22: #{_lambda_.1} parent=11 // pred_check_branch
        %214 = sbr.rel (%p212) target = $region24
      $region23: #{_lambda_.1} parent=11 // pred_region
        _
      $region24: #{_lambda_.1} parent=11 // pred_fallthru
        _
      // Predicated region
      $region25: #{_lambda_.1} parent=11 // pred_check
        %p215 = pneg %p123
      $region26: #{_lambda_.1} parent=11 // pred_check_branch
        %217 = sbr.rel (%p215) target = $region28
      $region27: #{_lambda_.1} parent=11 // pred_region
        _
      $region28: #{_lambda_.1} parent=11 // pred_fallthru
        _
      // Predicated region
      $region29: #{_lambda_.1} parent=11 // pred_check
        %p218 = pneg %p144
      $region30: #{_lambda_.1} parent=11 // pred_check_branch
        %220 = sbr.rel (%p218) target = $region32
      $region31: #{_lambda_.1} parent=11 // pred_region
        _
      $region32: #{_lambda_.1} parent=11 // pred_fallthru
        _
      // Predicated region
      $region33: #{_lambda_.1} parent=11 // pred_check
        %p221 = pneg %p165
      $region34: #{_lambda_.1} parent=11 // pred_check_branch
        %223 = sbr.rel (%p221) target = $region36
      $region35: #{_lambda_.1} parent=11 // pred_region
        _
      $region36: #{_lambda_.1} parent=11 // pred_fallthru
        _
    $region12: #{_lambda_.1} parent=5 // pred_fallthru
      _
    %p224 = scmp.lt.s32.totalorder %s13, 2
    // Predicated region
    $region37: #{_lambda_.1} parent=5 // pred_check
      %p225 = pneg %p224
    $region38: #{_lambda_.1} parent=5 // pred_check_branch
      %227 = sbr.rel (%p225) target = $region40
    $region39: #{_lambda_.1} parent=5 // pred_region
      // Predicated region
      $region41: #{_lambda_.1} parent=39 // pred_check
        %p228 = pneg %p33
      $region42: #{_lambda_.1} parent=39 // pred_check_branch
        %230 = sbr.rel (%p228) target = $region44
      $region43: #{_lambda_.1} parent=39 // pred_region
        %s231 = smul.u32 10, %s13
        %p232 = scmp.lt.s32.totalorder %s231, 19
        %s233 = scalar_select %p232, %s231, 19
        %s234 = smul.addr %s233, 8
        %s235 = scalar_lea.vmem %s0, %s234
        %s236 = smul.u32 10, %s13
      $region44: #{_lambda_.1} parent=39 // pred_fallthru
        _
    $region40: #{_lambda_.1} parent=5 // pred_fallthru
      _
    %p237 = scmp.le.s32.totalorder 1, %s13
    %p238 = scmp.lt.s32.totalorder %s13, 3
    %p239 = pnand %p237, %p238
    %p240 = pneg %p239
    // Predicated region
    $region45: #{_lambda_.1} parent=5 // pred_check
      _
    $region46: #{_lambda_.1} parent=5 // pred_check_branch
      %242 = sbr.rel (%p239) target = $region48
    $region47: #{_lambda_.1} parent=5 // pred_region
      %s243 = ssub.s32 %s13, 1
      %s244 = smul.u32 10, %s18
      %p245 = scmp.lt.s32.totalorder %s244, 19
      %s246 = scalar_select %p245, %s244, 19
      %s247 = smul.addr %s246, 8
      %s248 = scalar_lea.vmem %s0, %s247
      %p249 = pneg %p39
      %p250 = pneg %p36
      %p251 = pneg %p60
      %p252 = pneg %p57
      %p253 = pneg %p81
      %p254 = pneg %p78
      %p255 = pneg %p102
      %p256 = pneg %p99
      %p257 = pneg %p123
      %p258 = pneg %p120
      %p259 = pneg %p144
      %p260 = pneg %p141
      %p261 = pneg %p165
      %p262 = pneg %p162
      %p263 = pneg %p191
      %p264 = pneg %p188
      %s265 = smul.u32 2, %s18
      %p266 = scmp.lt.s32.totalorder %s265, 3
      %s267 = scalar_select %p266, %s265, 3
      %s268 = scalar_lea.vmem %s7, %s267
      %s269 = smul.u32 10, %s18
      %p270 = scmp.lt.s32.totalorder %s269, 19
      %s271 = scalar_select %p270, %s269, 19
      %s272 = smul.addr %s271, 8
      %s273 = scalar_lea.vmem %s0, %s272
      %s274 = smul.u32 10, %s18
      %s275 = smul.u32 2, %s18
      %p276 = scmp.lt.s32.totalorder %s275, 3
      %s277 = scalar_select %p276, %s275, 3
      %s278 = scalar_lea.vmem %s7, %s277
      %s279 = smul.u32 2, %s18
      %vm281 = vcmask 523264
      %282 = vst.msk [vmem:[#allocation2] sm:$0xff] %vm281, 0.0
      %283 = vst.msk [vmem:[#allocation2 + $0x8] sm:$0xff] %vm281, 0.0
      %284 = vst.msk [vmem:[#allocation2 + $0x10] sm:$0xff] %vm281, 0.0
      %285 = vst.msk [vmem:[#allocation2 + $0x18] sm:$0xff] %vm281, 0.0
      %286 = vst.msk [vmem:[#allocation2 + $0x20] sm:$0xff] %vm281, 0.0
      %287 = vst.msk [vmem:[#allocation2 + $0x28] sm:$0xff] %vm281, 0.0
      %v288 = vld [vmem:[%s5] sm:$0x1]
      %v289 = vld [vmem:[%s273] ss:$2 sm:$0xff]
      %s290 = scalar_lea.vmem %s273, 16
      %v291 = vld [vmem:[%s290] ss:$2 sm:$0xff]
      %s292 = scalar_lea.vmem %s273, 40
      %v293 = vld [vmem:[%s292] ss:$2 sm:$0xff]
      %s294 = scalar_lea.vmem %s273, 56
      %v295 = vld [vmem:[%s294] ss:$2 sm:$0xff]
      %v296 = vpack.c.bf16 %v291, %v289
      %v297 = vpack.c.bf16 %v295, %v293
      %v298 = vld [vmem:[%s1] sm:$0xf]
      %v299 = vld [vmem:[%s1 + $0x4] sm:$0xf]
      %v300 = vld [vmem:[%s1 + $0x8] sm:$0xf]
      %v301 = vld [vmem:[%s1 + $0xc] sm:$0xf]
      %v302 = vld [vmem:[%s1 + $0x10] sm:$0xf]
      %v303 = vld [vmem:[%s1 + $0x14] sm:$0xf]
      %v304 = vld [vmem:[%s1 + $0x18] sm:$0xf]
      %v305 = vld [vmem:[%s1 + $0x1c] sm:$0xf]
      %v306 = vld [vmem:[%s1 + $0x20] sm:$0xf]
      %v307 = vld [vmem:[%s1 + $0x24] sm:$0xf]
      %v308 = vld [vmem:[%s1 + $0x28] sm:$0xf]
      %v309 = vld [vmem:[%s1 + $0x2c] sm:$0xf]
      %s310 = scalar_lea.vmem %s273, 1
      %v311 = vld [vmem:[%s310] ss:$2 sm:$0xff]
      %s312 = scalar_lea.vmem %s273, 17
      %v313 = vld [vmem:[%s312] ss:$2 sm:$0xff]
      %s314 = scalar_lea.vmem %s273, 41
      %v315 = vld [vmem:[%s314] ss:$2 sm:$0xff]
      %s316 = scalar_lea.vmem %s273, 57
      %v317 = vld [vmem:[%s316] ss:$2 sm:$0xff]
      %v318 = vpack.c.bf16 %v313, %v311
      %v319 = vpack.c.bf16 %v317, %v315
      %s320 = scalar_lea.vmem %s1, 48
      %v321 = vld [vmem:[%s320] sm:$0xf]
      %v322 = vld [vmem:[%s320 + $0x4] sm:$0xf]
      %v323 = vld [vmem:[%s320 + $0x8] sm:$0xf]
      %v324 = vld [vmem:[%s320 + $0xc] sm:$0xf]
      %v325 = vld [vmem:[%s320 + $0x10] sm:$0xf]
      %v326 = vld [vmem:[%s320 + $0x14] sm:$0xf]
      %v327 = vld [vmem:[%s320 + $0x18] sm:$0xf]
      %v328 = vld [vmem:[%s320 + $0x1c] sm:$0xf]
      %v329 = vld [vmem:[%s320 + $0x20] sm:$0xf]
      %v330 = vld [vmem:[%s320 + $0x24] sm:$0xf]
      %v331 = vld [vmem:[%s320 + $0x28] sm:$0xf]
      %v332 = vld [vmem:[%s320 + $0x2c] sm:$0xf]
      %v345 = vunpack.c.l.b16 %v321
      %v346 = vunpack.c.l.b16 %v322
      %v347 = vunpack.c.l.b16 %v323
      %v348 = vunpack.c.l.b16 %v324
      %v349 = vunpack.c.l.b16 %v325
      %v350 = vunpack.c.l.b16 %v326
      %v351 = vunpack.c.l.b16 %v327
      %v352 = vunpack.c.l.b16 %v328
      %v353 = vunpack.c.l.b16 %v329
      %v354 = vunpack.c.l.b16 %v330
      %v355 = vunpack.c.l.b16 %v331
      %v356 = vunpack.c.l.b16 %v332
      %v357 = vpack.c.b16 %v346, %v345
      %v358 = vpack.c.b16 %v348, %v347
      %v359 = vpack.c.b16 %v350, %v349
      %v360 = vpack.c.b16 %v352, %v351
      %v361 = vpack.c.b16 %v354, %v353
      %v362 = vpack.c.b16 %v356, %v355
      %vm369 = vcmask 785408
      %v371 = vsel %vm369, %v318, 0
      %v374 = vsel %vm369, %v319, 0
      %376 = vmatprep.subr.bf16.mxu0 0
      %377 = vmatpush1.bf16.msra.mxu0 0
      %378 = vmatprep.subr.bf16.mxu0 0
      %379 = vmatpush1.bf16.msra.mxu0 0
      %380 = vmatprep.subr.bf16.mxu0 0
      %381 = vmatpush1.bf16.msra.mxu0 %v362
      %382 = vmatprep.subr.bf16.mxu0 0
      %383 = vmatpush1.bf16.msra.mxu0 %v361
      %384 = vmatprep.subr.bf16.mxu0 0
      %385 = vmatpush1.bf16.msra.mxu0 %v360
      %386 = vmatprep.subr.bf16.mxu0 0
      %387 = vmatpush1.bf16.msra.mxu0 %v359
      %388 = vmatprep.subr.bf16.mxu0 0
      %389 = vmatpush1.bf16.msra.mxu0 %v358
      %390 = vmatprep.subr.bf16.mxu0 0
      %391 = vmatpush1.bf16.msra.mxu0 %v357
      %392 = vmatprep.subr.bf16.mxu0 0
      %393 = vmatpush2.bf16.msra.mxu0 0
      %394 = vmatprep.subr.bf16.mxu0 0
      %395 = vmatpush2.bf16.msra.mxu0 0
      %396 = vmatprep.subr.bf16.mxu0 0
      %397 = vmatpush2.bf16.msra.mxu0 0
      %398 = vmatprep.subr.bf16.mxu0 0
      %399 = vmatpush2.bf16.msra.mxu0 0
      %400 = vmatprep.subr.bf16.mxu0 0
      %401 = vmatpush2.bf16.msra.mxu0 0
      %402 = vmatprep.subr.bf16.mxu0 0
      %403 = vmatpush2.bf16.msra.mxu0 0
      %404 = vmatprep.subr.bf16.mxu0 0
      %405 = vmatpush2.bf16.msra.mxu0 0
      %406 = vmatprep.subr.bf16.mxu0 0
      %407 = vmatpush2.bf16.msra.mxu0 0
      %408 = vmatprep.mubr.bf16.mxu0 0
      %409 = vmatmul.mubr.bf16.gmra.mxu0 %v371
      %v410 = vpop.f32.mrf.mxu0
      %v411 = vadd.f32 0.0, %v410
      %v412 = vpop.f32.mrf.mxu0
      %v413 = vpop.f32.mrf.mxu0
      %v414 = vadd.f32 0.0, %v413
      %v415 = vpop.f32.mrf.mxu0
      %416 = vmatprep.mubr.bf16.mxu0 0
      %417 = vmatmul.mubr.bf16.gmra.mxu0 %v374
      %v418 = vpop.f32.mrf.mxu0
      %v419 = vadd.f32 0.0, %v418
      %v420 = vpop.f32.mrf.mxu0
      %v421 = vpop.f32.mrf.mxu0
      %v422 = vadd.f32 0.0, %v421
      %v423 = vpop.f32.mrf.mxu0
      %424 = vdwg.mxu0
      %v437 = vunpack.c.l.b16 %v298
      %v438 = vunpack.c.l.b16 %v299
      %v439 = vunpack.c.l.b16 %v300
      %v440 = vunpack.c.l.b16 %v301
      %v441 = vunpack.c.l.b16 %v302
      %v442 = vunpack.c.l.b16 %v303
      %v443 = vunpack.c.l.b16 %v304
      %v444 = vunpack.c.l.b16 %v305
      %v445 = vunpack.c.l.b16 %v306
      %v446 = vunpack.c.l.b16 %v307
      %v447 = vunpack.c.l.b16 %v308
      %v448 = vunpack.c.l.b16 %v309
      %v449 = vpack.c.b16 %v438, %v437
      %v450 = vpack.c.b16 %v440, %v439
      %v451 = vpack.c.b16 %v442, %v441
      %v452 = vpack.c.b16 %v444, %v443
      %v453 = vpack.c.b16 %v446, %v445
      %v454 = vpack.c.b16 %v448, %v447
      %v462 = vsel %vm369, %v296, 0
      %v465 = vsel %vm369, %v297, 0
      %467 = vmatprep.subr.bf16.mxu0 0
      %468 = vmatpush1.bf16.msra.mxu0 0
      %469 = vmatprep.subr.bf16.mxu0 0
      %470 = vmatpush1.bf16.msra.mxu0 0
      %471 = vmatprep.subr.bf16.mxu0 0
      %472 = vmatpush1.bf16.msra.mxu0 %v454
      %473 = vmatprep.subr.bf16.mxu0 0
      %474 = vmatpush1.bf16.msra.mxu0 %v453
      %475 = vmatprep.subr.bf16.mxu0 0
      %476 = vmatpush1.bf16.msra.mxu0 %v452
      %477 = vmatprep.subr.bf16.mxu0 0
      %478 = vmatpush1.bf16.msra.mxu0 %v451
      %479 = vmatprep.subr.bf16.mxu0 0
      %480 = vmatpush1.bf16.msra.mxu0 %v450
      %481 = vmatprep.subr.bf16.mxu0 0
      %482 = vmatpush1.bf16.msra.mxu0 %v449
      %483 = vmatprep.subr.bf16.mxu0 0
      %484 = vmatpush2.bf16.msra.mxu0 0
      %485 = vmatprep.subr.bf16.mxu0 0
      %486 = vmatpush2.bf16.msra.mxu0 0
      %487 = vmatprep.subr.bf16.mxu0 0
      %488 = vmatpush2.bf16.msra.mxu0 0
      %489 = vmatprep.subr.bf16.mxu0 0
      %490 = vmatpush2.bf16.msra.mxu0 0
      %491 = vmatprep.subr.bf16.mxu0 0
      %492 = vmatpush2.bf16.msra.mxu0 0
      %493 = vmatprep.subr.bf16.mxu0 0
      %494 = vmatpush2.bf16.msra.mxu0 0
      %495 = vmatprep.subr.bf16.mxu0 0
      %496 = vmatpush2.bf16.msra.mxu0 0
      %497 = vmatprep.subr.bf16.mxu0 0
      %498 = vmatpush2.bf16.msra.mxu0 0
      %499 = vmatprep.mubr.bf16.mxu0 0
      %500 = vmatmul.mubr.bf16.gmra.mxu0 %v462
      %v501 = vpop.f32.mrf.mxu0
      %v502 = vadd.f32 %v411, %v501
      %v503 = vpop.f32.mrf.mxu0
      %v504 = vpop.f32.mrf.mxu0
      %v505 = vadd.f32 %v414, %v504
      %v506 = vpop.f32.mrf.mxu0
      %507 = vmatprep.mubr.bf16.mxu0 0
      %508 = vmatmul.mubr.bf16.gmra.mxu0 %v465
      %v509 = vpop.f32.mrf.mxu0
      %v510 = vadd.f32 %v419, %v509
      %v511 = vpop.f32.mrf.mxu0
      %v512 = vpop.f32.mrf.mxu0
      %v513 = vadd.f32 %v422, %v512
      %v514 = vpop.f32.mrf.mxu0
      %515 = vdwg.mxu0
      %s516 = scalar_lea.vmem %s273, 2
      %v517 = vld [vmem:[%s516] ss:$2 sm:$0xff]
      %s518 = scalar_lea.vmem %s273, 18
      %v519 = vld [vmem:[%s518] ss:$2 sm:$0xff]
      %s520 = scalar_lea.vmem %s273, 42
      %v521 = vld [vmem:[%s520] ss:$2 sm:$0xff]
      %s522 = scalar_lea.vmem %s273, 58
      %v523 = vld [vmem:[%s522] ss:$2 sm:$0xff]
      %v524 = vpack.c.bf16 %v519, %v517
      %v525 = vpack.c.bf16 %v523, %v521
      %s526 = scalar_lea.vmem %s1, 96
      %v527 = vld [vmem:[%s526] sm:$0xf]
      %v528 = vld [vmem:[%s526 + $0x4] sm:$0xf]
      %v529 = vld [vmem:[%s526 + $0x8] sm:$0xf]
      %v530 = vld [vmem:[%s526 + $0xc] sm:$0xf]
      %v531 = vld [vmem:[%s526 + $0x10] sm:$0xf]
      %v532 = vld [vmem:[%s526 + $0x14] sm:$0xf]
      %v533 = vld [vmem:[%s526 + $0x18] sm:$0xf]
      %v534 = vld [vmem:[%s526 + $0x1c] sm:$0xf]
      %v535 = vld [vmem:[%s526 + $0x20] sm:$0xf]
      %v536 = vld [vmem:[%s526 + $0x24] sm:$0xf]
      %v537 = vld [vmem:[%s526 + $0x28] sm:$0xf]
      %v538 = vld [vmem:[%s526 + $0x2c] sm:$0xf]
      %v551 = vunpack.c.l.b16 %v527
      %v552 = vunpack.c.l.b16 %v528
      %v553 = vunpack.c.l.b16 %v529
      %v554 = vunpack.c.l.b16 %v530
      %v555 = vunpack.c.l.b16 %v531
      %v556 = vunpack.c.l.b16 %v532
      %v557 = vunpack.c.l.b16 %v533
      %v558 = vunpack.c.l.b16 %v534
      %v559 = vunpack.c.l.b16 %v535
      %v560 = vunpack.c.l.b16 %v536
      %v561 = vunpack.c.l.b16 %v537
      %v562 = vunpack.c.l.b16 %v538
      %v563 = vpack.c.b16 %v552, %v551
      %v564 = vpack.c.b16 %v554, %v553
      %v565 = vpack.c.b16 %v556, %v555
      %v566 = vpack.c.b16 %v558, %v557
      %v567 = vpack.c.b16 %v560, %v559
      %v568 = vpack.c.b16 %v562, %v561
      %v576 = vsel %vm369, %v524, 0
      %v579 = vsel %vm369, %v525, 0
      %581 = vmatprep.subr.bf16.mxu0 0
      %582 = vmatpush1.bf16.msra.mxu0 0
      %583 = vmatprep.subr.bf16.mxu0 0
      %584 = vmatpush1.bf16.msra.mxu0 0
      %585 = vmatprep.subr.bf16.mxu0 0
      %586 = vmatpush1.bf16.msra.mxu0 %v568
      %587 = vmatprep.subr.bf16.mxu0 0
      %588 = vmatpush1.bf16.msra.mxu0 %v567
      %589 = vmatprep.subr.bf16.mxu0 0
      %590 = vmatpush1.bf16.msra.mxu0 %v566
      %591 = vmatprep.subr.bf16.mxu0 0
      %592 = vmatpush1.bf16.msra.mxu0 %v565
      %593 = vmatprep.subr.bf16.mxu0 0
      %594 = vmatpush1.bf16.msra.mxu0 %v564
      %595 = vmatprep.subr.bf16.mxu0 0
      %596 = vmatpush1.bf16.msra.mxu0 %v563
      %597 = vmatprep.subr.bf16.mxu0 0
      %598 = vmatpush2.bf16.msra.mxu0 0
      %599 = vmatprep.subr.bf16.mxu0 0
      %600 = vmatpush2.bf16.msra.mxu0 0
      %601 = vmatprep.subr.bf16.mxu0 0
      %602 = vmatpush2.bf16.msra.mxu0 0
      %603 = vmatprep.subr.bf16.mxu0 0
      %604 = vmatpush2.bf16.msra.mxu0 0
      %605 = vmatprep.subr.bf16.mxu0 0
      %606 = vmatpush2.bf16.msra.mxu0 0
      %607 = vmatprep.subr.bf16.mxu0 0
      %608 = vmatpush2.bf16.msra.mxu0 0
      %609 = vmatprep.subr.bf16.mxu0 0
      %610 = vmatpush2.bf16.msra.mxu0 0
      %611 = vmatprep.subr.bf16.mxu0 0
      %612 = vmatpush2.bf16.msra.mxu0 0
      %613 = vmatprep.mubr.bf16.mxu0 0
      %614 = vmatmul.mubr.bf16.gmra.mxu0 %v576
      %v615 = vpop.f32.mrf.mxu0
      %v616 = vadd.f32 0.0, %v615
      %v617 = vpop.f32.mrf.mxu0
      %v618 = vpop.f32.mrf.mxu0
      %v619 = vadd.f32 0.0, %v618
      %v620 = vpop.f32.mrf.mxu0
      %621 = vmatprep.mubr.bf16.mxu0 0
      %622 = vmatmul.mubr.bf16.gmra.mxu0 %v579
      %v623 = vpop.f32.mrf.mxu0
      %v624 = vadd.f32 0.0, %v623
      %v625 = vpop.f32.mrf.mxu0
      %v626 = vpop.f32.mrf.mxu0
      %v627 = vadd.f32 0.0, %v626
      %v628 = vpop.f32.mrf.mxu0
      %629 = vdwg.mxu0
      %v630 = vadd.f32 %v502, %v616
      %v631 = vadd.f32 %v505, %v619
      %v632 = vadd.f32 %v510, %v624
      %v633 = vadd.f32 %v513, %v627
      %v634 = vlaneseq
      %v635 = vshrl.u32 %v634, 7
      %v636 = vsub.s32 0, %v635
      %v637 = vrot.slane %v288, %v636
      %v638 = vadd.f32 %v630, %v637
      %v639 = vadd.f32 %v631, %v637
      %v640 = vadd.f32 %v632, %v637
      %v641 = vadd.f32 %v633, %v637
      %v642 = vmul.f32 %v638, 0.5
      %v643 = vmul.f32 %v639, 0.5
      %v644 = vmul.f32 %v640, 0.5
      %v645 = vmul.f32 %v641, 0.5
      %v646 = vmul.f32 %v638, %v638
      %v647 = vmul.f32 %v639, %v639
      %v648 = vmul.f32 %v640, %v640
      %v649 = vmul.f32 %v641, %v641
      %v650 = vmul.f32 %v646, %v638
      %v651 = vmul.f32 %v647, %v639
      %v652 = vmul.f32 %v648, %v640
      %v653 = vmul.f32 %v649, %v641
      %v654 = vmul.f32 %v650, 0.044715
      %v655 = vmul.f32 %v651, 0.044715
      %v656 = vmul.f32 %v652, 0.044715
      %v657 = vmul.f32 %v653, 0.044715
      %v658 = vadd.f32 %v638, %v654
      %v659 = vadd.f32 %v639, %v655
      %v660 = vadd.f32 %v640, %v656
      %v661 = vadd.f32 %v641, %v657
      %v662 = vmul.f32 %v658, 0.7978846
      %v663 = vmul.f32 %v659, 0.7978846
      %v664 = vmul.f32 %v660, 0.7978846
      %v665 = vmul.f32 %v661, 0.7978846
      %v666 = vtanh.pop %v662
      %v667 = vtanh.pop %v663
      %v668 = vtanh.pop %v664
      %v669 = vtanh.pop %v665
      %v670 = vadd.f32 %v666, 1.0
      %v671 = vadd.f32 %v667, 1.0
      %v672 = vadd.f32 %v668, 1.0
      %v673 = vadd.f32 %v669, 1.0
      %v674 = vmul.f32 %v642, %v670
      %v675 = vmul.f32 %v643, %v671
      %v676 = vmul.f32 %v644, %v672
      %v677 = vmul.f32 %v645, %v673
      %678 = vst.msk [vmem:[#allocation2 + $0x1] sm:$0xff] %vm281, %v674
      %679 = vst.msk [vmem:[#allocation2 + $0x9] sm:$0xff] %vm281, %v675
      %vm680 = vcmask 516096
      %681 = vst.msk [vmem:[#allocation2 + $0x11] sm:$0x1] %vm680, 0.0
      %682 = vst.msk [vmem:[#allocation2 + $0x19] sm:$0xff] %vm281, %v676
      %683 = vst.msk [vmem:[#allocation2 + $0x21] sm:$0xff] %vm281, %v677
      %684 = vst.msk [vmem:[#allocation2 + $0x29] sm:$0x1] %vm680, 0.0
      %v685 = vld [vmem:[%s5 + $0x1] sm:$0x1]
      %v686 = vld [vmem:[#allocation2] ss:$2 sm:$0xff]
      %s687 = scalar_lea.vmem [#allocation2], 24
      %v688 = vld [vmem:[%s687] ss:$2 sm:$0xff]
      %v689 = vpack.c.bf16 %v688, %v686
      %v690 = vld [vmem:[%s2] sm:$0xf]
      %v691 = vld [vmem:[%s2 + $0x4] sm:$0xf]
      %v692 = vld [vmem:[%s2 + $0x8] sm:$0xf]
      %v693 = vld [vmem:[%s2 + $0xc] sm:$0xf]
      %v694 = vld [vmem:[%s2 + $0x10] sm:$0xf]
      %v695 = vld [vmem:[%s2 + $0x14] sm:$0xf]
      %v696 = vld [vmem:[%s2 + $0x18] sm:$0xf]
      %v697 = vld [vmem:[%s2 + $0x1c] sm:$0xf]
      %s698 = scalar_lea.vmem [#allocation2], 1
      %v699 = vld [vmem:[%s698] ss:$2 sm:$0xff]
      %s700 = scalar_lea.vmem [#allocation2], 25
      %v701 = vld [vmem:[%s700] ss:$2 sm:$0xff]
      %v702 = vpack.c.bf16 %v701, %v699
      %s703 = scalar_lea.vmem %s2, 32
      %v704 = vld [vmem:[%s703] sm:$0xf]
      %v705 = vld [vmem:[%s703 + $0x4] sm:$0xf]
      %v706 = vld [vmem:[%s703 + $0x8] sm:$0xf]
      %v707 = vld [vmem:[%s703 + $0xc] sm:$0xf]
      %v708 = vld [vmem:[%s703 + $0x10] sm:$0xf]
      %v709 = vld [vmem:[%s703 + $0x14] sm:$0xf]
      %v710 = vld [vmem:[%s703 + $0x18] sm:$0xf]
      %v711 = vld [vmem:[%s703 + $0x1c] sm:$0xf]
      %v720 = vunpack.c.l.b16 %v704
      %v721 = vunpack.c.l.b16 %v705
      %v722 = vunpack.c.l.b16 %v706
      %v723 = vunpack.c.l.b16 %v707
      %v724 = vunpack.c.l.b16 %v708
      %v725 = vunpack.c.l.b16 %v709
      %v726 = vunpack.c.l.b16 %v710
      %v727 = vunpack.c.l.b16 %v711
      %v728 = vpack.c.b16 %v721, %v720
      %v729 = vpack.c.b16 %v723, %v722
      %v730 = vpack.c.b16 %v725, %v724
      %v731 = vpack.c.b16 %v727, %v726
      %v737 = vsel %vm281, %v702, 0
      %739 = vmatprep.subr.bf16.mxu0 0
      %740 = vmatpush1.bf16.msra.mxu0 0
      %741 = vmatprep.subr.bf16.mxu0 0
      %742 = vmatpush1.bf16.msra.mxu0 0
      %743 = vmatprep.subr.bf16.mxu0 0
      %744 = vmatpush1.bf16.msra.mxu0 0
      %745 = vmatprep.subr.bf16.mxu0 0
      %746 = vmatpush1.bf16.msra.mxu0 0
      %747 = vmatprep.subr.bf16.mxu0 0
      %748 = vmatpush1.bf16.msra.mxu0 %v731
      %749 = vmatprep.subr.bf16.mxu0 0
      %750 = vmatpush1.bf16.msra.mxu0 %v730
      %751 = vmatprep.subr.bf16.mxu0 0
      %752 = vmatpush1.bf16.msra.mxu0 %v729
      %753 = vmatprep.subr.bf16.mxu0 0
      %754 = vmatpush1.bf16.msra.mxu0 %v728
      %755 = vmatprep.subr.bf16.mxu0 0
      %756 = vmatpush2.bf16.msra.mxu0 0
      %757 = vmatprep.subr.bf16.mxu0 0
      %758 = vmatpush2.bf16.msra.mxu0 0
      %759 = vmatprep.subr.bf16.mxu0 0
      %760 = vmatpush2.bf16.msra.mxu0 0
      %761 = vmatprep.subr.bf16.mxu0 0
      %762 = vmatpush2.bf16.msra.mxu0 0
      %763 = vmatprep.subr.bf16.mxu0 0
      %764 = vmatpush2.bf16.msra.mxu0 0
      %765 = vmatprep.subr.bf16.mxu0 0
      %766 = vmatpush2.bf16.msra.mxu0 0
      %767 = vmatprep.subr.bf16.mxu0 0
      %768 = vmatpush2.bf16.msra.mxu0 0
      %769 = vmatprep.subr.bf16.mxu0 0
      %770 = vmatpush2.bf16.msra.mxu0 0
      %771 = vmatprep.mubr.bf16.mxu0 0
      %772 = vmatmul.mubr.bf16.gmra.mxu0 %v737
      %v773 = vpop.f32.mrf.mxu0
      %v774 = vadd.f32 0.0, %v773
      %v775 = vpop.f32.mrf.mxu0
      %v776 = vpop.f32.mrf.mxu0
      %v777 = vadd.f32 0.0, %v776
      %v778 = vpop.f32.mrf.mxu0
      %779 = vdwg.mxu0
      %v788 = vunpack.c.l.b16 %v690
      %v789 = vunpack.c.l.b16 %v691
      %v790 = vunpack.c.l.b16 %v692
      %v791 = vunpack.c.l.b16 %v693
      %v792 = vunpack.c.l.b16 %v694
      %v793 = vunpack.c.l.b16 %v695
      %v794 = vunpack.c.l.b16 %v696
      %v795 = vunpack.c.l.b16 %v697
      %v796 = vpack.c.b16 %v789, %v788
      %v797 = vpack.c.b16 %v791, %v790
      %v798 = vpack.c.b16 %v793, %v792
      %v799 = vpack.c.b16 %v795, %v794
      %v805 = vsel %vm281, %v689, 0
      %807 = vmatprep.subr.bf16.mxu0 0
      %808 = vmatpush1.bf16.msra.mxu0 0
      %809 = vmatprep.subr.bf16.mxu0 0
      %810 = vmatpush1.bf16.msra.mxu0 0
      %811 = vmatprep.subr.bf16.mxu0 0
      %812 = vmatpush1.bf16.msra.mxu0 0
      %813 = vmatprep.subr.bf16.mxu0 0
      %814 = vmatpush1.bf16.msra.mxu0 0
      %815 = vmatprep.subr.bf16.mxu0 0
      %816 = vmatpush1.bf16.msra.mxu0 %v799
      %817 = vmatprep.subr.bf16.mxu0 0
      %818 = vmatpush1.bf16.msra.mxu0 %v798
      %819 = vmatprep.subr.bf16.mxu0 0
      %820 = vmatpush1.bf16.msra.mxu0 %v797
      %821 = vmatprep.subr.bf16.mxu0 0
      %822 = vmatpush1.bf16.msra.mxu0 %v796
      %823 = vmatprep.subr.bf16.mxu0 0
      %824 = vmatpush2.bf16.msra.mxu0 0
      %825 = vmatprep.subr.bf16.mxu0 0
      %826 = vmatpush2.bf16.msra.mxu0 0
      %827 = vmatprep.subr.bf16.mxu0 0
      %828 = vmatpush2.bf16.msra.mxu0 0
      %829 = vmatprep.subr.bf16.mxu0 0
      %830 = vmatpush2.bf16.msra.mxu0 0
      %831 = vmatprep.subr.bf16.mxu0 0
      %832 = vmatpush2.bf16.msra.mxu0 0
      %833 = vmatprep.subr.bf16.mxu0 0
      %834 = vmatpush2.bf16.msra.mxu0 0
      %835 = vmatprep.subr.bf16.mxu0 0
      %836 = vmatpush2.bf16.msra.mxu0 0
      %837 = vmatprep.subr.bf16.mxu0 0
      %838 = vmatpush2.bf16.msra.mxu0 0
      %839 = vmatprep.mubr.bf16.mxu0 0
      %840 = vmatmul.mubr.bf16.gmra.mxu0 %v805
      %v841 = vpop.f32.mrf.mxu0
      %v842 = vadd.f32 %v774, %v841
      %v843 = vpop.f32.mrf.mxu0
      %v844 = vpop.f32.mrf.mxu0
      %v845 = vadd.f32 %v777, %v844
      %v846 = vpop.f32.mrf.mxu0
      %847 = vdwg.mxu0
      %s848 = scalar_lea.vmem [#allocation2], 2
      %v849 = vld [vmem:[%s848] ss:$2 sm:$0xff]
      %s850 = scalar_lea.vmem [#allocation2], 26
      %v851 = vld [vmem:[%s850] ss:$2 sm:$0xff]
      %v852 = vpack.c.bf16 %v851, %v849
      %s853 = scalar_lea.vmem %s2, 64
      %v854 = vld [vmem:[%s853] sm:$0xf]
      %v855 = vld [vmem:[%s853 + $0x4] sm:$0xf]
      %v856 = vld [vmem:[%s853 + $0x8] sm:$0xf]
      %v857 = vld [vmem:[%s853 + $0xc] sm:$0xf]
      %v858 = vld [vmem:[%s853 + $0x10] sm:$0xf]
      %v859 = vld [vmem:[%s853 + $0x14] sm:$0xf]
      %v860 = vld [vmem:[%s853 + $0x18] sm:$0xf]
      %v861 = vld [vmem:[%s853 + $0x1c] sm:$0xf]
      %v870 = vunpack.c.l.b16 %v854
      %v871 = vunpack.c.l.b16 %v855
      %v872 = vunpack.c.l.b16 %v856
      %v873 = vunpack.c.l.b16 %v857
      %v874 = vunpack.c.l.b16 %v858
      %v875 = vunpack.c.l.b16 %v859
      %v876 = vunpack.c.l.b16 %v860
      %v877 = vunpack.c.l.b16 %v861
      %v878 = vpack.c.b16 %v871, %v870
      %v879 = vpack.c.b16 %v873, %v872
      %v880 = vpack.c.b16 %v875, %v874
      %v881 = vpack.c.b16 %v877, %v876
      %v887 = vsel %vm281, %v852, 0
      %889 = vmatprep.subr.bf16.mxu0 0
      %890 = vmatpush1.bf16.msra.mxu0 0
      %891 = vmatprep.subr.bf16.mxu0 0
      %892 = vmatpush1.bf16.msra.mxu0 0
      %893 = vmatprep.subr.bf16.mxu0 0
      %894 = vmatpush1.bf16.msra.mxu0 0
      %895 = vmatprep.subr.bf16.mxu0 0
      %896 = vmatpush1.bf16.msra.mxu0 0
      %897 = vmatprep.subr.bf16.mxu0 0
      %898 = vmatpush1.bf16.msra.mxu0 %v881
      %899 = vmatprep.subr.bf16.mxu0 0
      %900 = vmatpush1.bf16.msra.mxu0 %v880
      %901 = vmatprep.subr.bf16.mxu0 0
      %902 = vmatpush1.bf16.msra.mxu0 %v879
      %903 = vmatprep.subr.bf16.mxu0 0
      %904 = vmatpush1.bf16.msra.mxu0 %v878
      %905 = vmatprep.subr.bf16.mxu0 0
      %906 = vmatpush2.bf16.msra.mxu0 0
      %907 = vmatprep.subr.bf16.mxu0 0
      %908 = vmatpush2.bf16.msra.mxu0 0
      %909 = vmatprep.subr.bf16.mxu0 0
      %910 = vmatpush2.bf16.msra.mxu0 0
      %911 = vmatprep.subr.bf16.mxu0 0
      %912 = vmatpush2.bf16.msra.mxu0 0
      %913 = vmatprep.subr.bf16.mxu0 0
      %914 = vmatpush2.bf16.msra.mxu0 0
      %915 = vmatprep.subr.bf16.mxu0 0
      %916 = vmatpush2.bf16.msra.mxu0 0
      %917 = vmatprep.subr.bf16.mxu0 0
      %918 = vmatpush2.bf16.msra.mxu0 0
      %919 = vmatprep.subr.bf16.mxu0 0
      %920 = vmatpush2.bf16.msra.mxu0 0
      %921 = vmatprep.mubr.bf16.mxu0 0
      %922 = vmatmul.mubr.bf16.gmra.mxu0 %v887
      %v923 = vpop.f32.mrf.mxu0
      %v924 = vadd.f32 0.0, %v923
      %v925 = vpop.f32.mrf.mxu0
      %v926 = vpop.f32.mrf.mxu0
      %v927 = vadd.f32 0.0, %v926
      %v928 = vpop.f32.mrf.mxu0
      %929 = vdwg.mxu0
      %v930 = vadd.f32 %v842, %v924
      %v931 = vadd.f32 %v845, %v927
      %v932 = vlaneseq
      %v933 = vshrl.u32 %v932, 7
      %v934 = vsub.s32 0, %v933
      %v935 = vrot.slane %v685, %v934
      %v936 = vadd.f32 %v930, %v935
      %v937 = vadd.f32 %v931, %v935
      %v938 = vmul.f32 %v936, 0.5
      %v939 = vmul.f32 %v937, 0.5
      %v940 = vmul.f32 %v936, %v936
      %v941 = vmul.f32 %v937, %v937
      %v942 = vmul.f32 %v940, %v936
      %v943 = vmul.f32 %v941, %v937
      %v944 = vmul.f32 %v942, 0.044715
      %v945 = vmul.f32 %v943, 0.044715
      %v946 = vadd.f32 %v936, %v944
      %v947 = vadd.f32 %v937, %v945
      %v948 = vmul.f32 %v946, 0.7978846
      %v949 = vmul.f32 %v947, 0.7978846
      %v950 = vtanh.pop %v948
      %v951 = vtanh.pop %v949
      %v952 = vadd.f32 %v950, 1.0
      %v953 = vadd.f32 %v951, 1.0
      %v954 = vmul.f32 %v938, %v952
      %v955 = vmul.f32 %v939, %v953
      %956 = vst.msk [vmem:[#allocation2 + $0x1] sm:$0xff] %vm281, %v954
      %957 = vst.msk [vmem:[#allocation2 + $0x9] sm:$0x1] %vm680, 0.0
      %958 = vst.msk [vmem:[#allocation2 + $0x19] sm:$0xff] %vm281, %v955
      %959 = vst.msk [vmem:[#allocation2 + $0x21] sm:$0x1] %vm680, 0.0
      %v960 = vld [vmem:[%s5 + $0x2] sm:$0x1]
      %v961 = vld [vmem:[#allocation2] ss:$2 sm:$0xf]
      %v962 = vpack.c.bf16 %v961, %v961
      %v963 = vld [vmem:[%s3] sm:$0xf]
      %v964 = vld [vmem:[%s3 + $0x4] sm:$0xf]
      %v965 = vld [vmem:[%s3 + $0x8] sm:$0xf]
      %v966 = vld [vmem:[%s3 + $0xc] sm:$0xf]
      %v967 = vld [vmem:[%s3 + $0x10] sm:$0xf]
      %v968 = vld [vmem:[%s3 + $0x14] sm:$0xf]
      %v969 = vld [vmem:[%s3 + $0x18] sm:$0xf]
      %v970 = vld [vmem:[%s3 + $0x1c] sm:$0xf]
      %v971 = vld [vmem:[%s698] ss:$2 sm:$0xf]
      %v972 = vpack.c.bf16 %v971, %v971
      %s973 = scalar_lea.vmem %s3, 32
      %v974 = vld [vmem:[%s973] sm:$0xf]
      %v975 = vld [vmem:[%s973 + $0x4] sm:$0xf]
      %v976 = vld [vmem:[%s973 + $0x8] sm:$0xf]
      %v977 = vld [vmem:[%s973 + $0xc] sm:$0xf]
      %v978 = vld [vmem:[%s973 + $0x10] sm:$0xf]
      %v979 = vld [vmem:[%s973 + $0x14] sm:$0xf]
      %v980 = vld [vmem:[%s973 + $0x18] sm:$0xf]
      %v981 = vld [vmem:[%s973 + $0x1c] sm:$0xf]
      %v990 = vunpack.c.l.b16 %v974
      %v991 = vunpack.c.l.b16 %v975
      %v992 = vunpack.c.l.b16 %v976
      %v993 = vunpack.c.l.b16 %v977
      %v994 = vunpack.c.l.b16 %v978
      %v995 = vunpack.c.l.b16 %v979
      %v996 = vunpack.c.l.b16 %v980
      %v997 = vunpack.c.l.b16 %v981
      %v998 = vpack.c.b16 %v991, %v990
      %v999 = vpack.c.b16 %v993, %v992
      %v1000 = vpack.c.b16 %v995, %v994
      %v1001 = vpack.c.b16 %v997, %v996
      %v1007 = vsel %vm281, %v972, 0
      %1009 = vmatprep.subr.bf16.mxu0 0
      %1010 = vmatpush1.bf16.msra.mxu0 0
      %1011 = vmatprep.subr.bf16.mxu0 0
      %1012 = vmatpush1.bf16.msra.mxu0 0
      %1013 = vmatprep.subr.bf16.mxu0 0
      %1014 = vmatpush1.bf16.msra.mxu0 0
      %1015 = vmatprep.subr.bf16.mxu0 0
      %1016 = vmatpush1.bf16.msra.mxu0 0
      %1017 = vmatprep.subr.bf16.mxu0 0
      %1018 = vmatpush1.bf16.msra.mxu0 %v1001
      %1019 = vmatprep.subr.bf16.mxu0 0
      %1020 = vmatpush1.bf16.msra.mxu0 %v1000
      %1021 = vmatprep.subr.bf16.mxu0 0
      %1022 = vmatpush1.bf16.msra.mxu0 %v999
      %1023 = vmatprep.subr.bf16.mxu0 0
      %1024 = vmatpush1.bf16.msra.mxu0 %v998
      %1025 = vmatprep.subr.bf16.mxu0 0
      %1026 = vmatpush2.bf16.msra.mxu0 0
      %1027 = vmatprep.subr.bf16.mxu0 0
      %1028 = vmatpush2.bf16.msra.mxu0 0
      %1029 = vmatprep.subr.bf16.mxu0 0
      %1030 = vmatpush2.bf16.msra.mxu0 0
      %1031 = vmatprep.subr.bf16.mxu0 0
      %1032 = vmatpush2.bf16.msra.mxu0 0
      %1033 = vmatprep.subr.bf16.mxu0 0
      %1034 = vmatpush2.bf16.msra.mxu0 0
      %1035 = vmatprep.subr.bf16.mxu0 0
      %1036 = vmatpush2.bf16.msra.mxu0 0
      %1037 = vmatprep.subr.bf16.mxu0 0
      %1038 = vmatpush2.bf16.msra.mxu0 0
      %1039 = vmatprep.subr.bf16.mxu0 0
      %1040 = vmatpush2.bf16.msra.mxu0 0
      %1041 = vmatprep.mubr.bf16.mxu0 0
      %1042 = vmatmul.mubr.bf16.gmra.mxu0 %v1007
      %v1043 = vpop.f32.mrf.mxu0
      %v1044 = vadd.f32 0.0, %v1043
      %v1045 = vpop.f32.mrf.mxu0
      %v1046 = vpop.f32.mrf.mxu0
      %v1047 = vpop.f32.mrf.mxu0
      %1048 = vdwg.mxu0
      %v1057 = vunpack.c.l.b16 %v963
      %v1058 = vunpack.c.l.b16 %v964
      %v1059 = vunpack.c.l.b16 %v965
      %v1060 = vunpack.c.l.b16 %v966
      %v1061 = vunpack.c.l.b16 %v967
      %v1062 = vunpack.c.l.b16 %v968
      %v1063 = vunpack.c.l.b16 %v969
      %v1064 = vunpack.c.l.b16 %v970
      %v1065 = vpack.c.b16 %v1058, %v1057
      %v1066 = vpack.c.b16 %v1060, %v1059
      %v1067 = vpack.c.b16 %v1062, %v1061
      %v1068 = vpack.c.b16 %v1064, %v1063
      %v1074 = vsel %vm281, %v962, 0
      %1076 = vmatprep.subr.bf16.mxu0 0
      %1077 = vmatpush1.bf16.msra.mxu0 0
      %1078 = vmatprep.subr.bf16.mxu0 0
      %1079 = vmatpush1.bf16.msra.mxu0 0
      %1080 = vmatprep.subr.bf16.mxu0 0
      %1081 = vmatpush1.bf16.msra.mxu0 0
      %1082 = vmatprep.subr.bf16.mxu0 0
      %1083 = vmatpush1.bf16.msra.mxu0 0
      %1084 = vmatprep.subr.bf16.mxu0 0
      %1085 = vmatpush1.bf16.msra.mxu0 %v1068
      %1086 = vmatprep.subr.bf16.mxu0 0
      %1087 = vmatpush1.bf16.msra.mxu0 %v1067
      %1088 = vmatprep.subr.bf16.mxu0 0
      %1089 = vmatpush1.bf16.msra.mxu0 %v1066
      %1090 = vmatprep.subr.bf16.mxu0 0
      %1091 = vmatpush1.bf16.msra.mxu0 %v1065
      %1092 = vmatprep.subr.bf16.mxu0 0
      %1093 = vmatpush2.bf16.msra.mxu0 0
      %1094 = vmatprep.subr.bf16.mxu0 0
      %1095 = vmatpush2.bf16.msra.mxu0 0
      %1096 = vmatprep.subr.bf16.mxu0 0
      %1097 = vmatpush2.bf16.msra.mxu0 0
      %1098 = vmatprep.subr.bf16.mxu0 0
      %1099 = vmatpush2.bf16.msra.mxu0 0
      %1100 = vmatprep.subr.bf16.mxu0 0
      %1101 = vmatpush2.bf16.msra.mxu0 0
      %1102 = vmatprep.subr.bf16.mxu0 0
      %1103 = vmatpush2.bf16.msra.mxu0 0
      %1104 = vmatprep.subr.bf16.mxu0 0
      %1105 = vmatpush2.bf16.msra.mxu0 0
      %1106 = vmatprep.subr.bf16.mxu0 0
      %1107 = vmatpush2.bf16.msra.mxu0 0
      %1108 = vmatprep.mubr.bf16.mxu0 0
      %1109 = vmatmul.mubr.bf16.gmra.mxu0 %v1074
      %v1110 = vpop.f32.mrf.mxu0
      %v1111 = vadd.f32 %v1044, %v1110
      %v1112 = vpop.f32.mrf.mxu0
      %v1113 = vpop.f32.mrf.mxu0
      %v1114 = vpop.f32.mrf.mxu0
      %1115 = vdwg.mxu0
      %v1116 = vld [vmem:[%s848] ss:$2 sm:$0xf]
      %v1117 = vpack.c.bf16 %v1116, %v1116
      %s1118 = scalar_lea.vmem %s3, 64
      %v1119 = vld [vmem:[%s1118] sm:$0xf]
      %v1120 = vld [vmem:[%s1118 + $0x4] sm:$0xf]
      %v1121 = vld [vmem:[%s1118 + $0x8] sm:$0xf]
      %v1122 = vld [vmem:[%s1118 + $0xc] sm:$0xf]
      %v1123 = vld [vmem:[%s1118 + $0x10] sm:$0xf]
      %v1124 = vld [vmem:[%s1118 + $0x14] sm:$0xf]
      %v1125 = vld [vmem:[%s1118 + $0x18] sm:$0xf]
      %v1126 = vld [vmem:[%s1118 + $0x1c] sm:$0xf]
      %v1135 = vunpack.c.l.b16 %v1119
      %v1136 = vunpack.c.l.b16 %v1120
      %v1137 = vunpack.c.l.b16 %v1121
      %v1138 = vunpack.c.l.b16 %v1122
      %v1139 = vunpack.c.l.b16 %v1123
      %v1140 = vunpack.c.l.b16 %v1124
      %v1141 = vunpack.c.l.b16 %v1125
      %v1142 = vunpack.c.l.b16 %v1126
      %v1143 = vpack.c.b16 %v1136, %v1135
      %v1144 = vpack.c.b16 %v1138, %v1137
      %v1145 = vpack.c.b16 %v1140, %v1139
      %v1146 = vpack.c.b16 %v1142, %v1141
      %v1152 = vsel %vm281, %v1117, 0
      %1154 = vmatprep.subr.bf16.mxu0 0
      %1155 = vmatpush1.bf16.msra.mxu0 0
      %1156 = vmatprep.subr.bf16.mxu0 0
      %1157 = vmatpush1.bf16.msra.mxu0 0
      %1158 = vmatprep.subr.bf16.mxu0 0
      %1159 = vmatpush1.bf16.msra.mxu0 0
      %1160 = vmatprep.subr.bf16.mxu0 0
      %1161 = vmatpush1.bf16.msra.mxu0 0
      %1162 = vmatprep.subr.bf16.mxu0 0
      %1163 = vmatpush1.bf16.msra.mxu0 %v1146
      %1164 = vmatprep.subr.bf16.mxu0 0
      %1165 = vmatpush1.bf16.msra.mxu0 %v1145
      %1166 = vmatprep.subr.bf16.mxu0 0
      %1167 = vmatpush1.bf16.msra.mxu0 %v1144
      %1168 = vmatprep.subr.bf16.mxu0 0
      %1169 = vmatpush1.bf16.msra.mxu0 %v1143
      %1170 = vmatprep.subr.bf16.mxu0 0
      %1171 = vmatpush2.bf16.msra.mxu0 0
      %1172 = vmatprep.subr.bf16.mxu0 0
      %1173 = vmatpush2.bf16.msra.mxu0 0
      %1174 = vmatprep.subr.bf16.mxu0 0
      %1175 = vmatpush2.bf16.msra.mxu0 0
      %1176 = vmatprep.subr.bf16.mxu0 0
      %1177 = vmatpush2.bf16.msra.mxu0 0
      %1178 = vmatprep.subr.bf16.mxu0 0
      %1179 = vmatpush2.bf16.msra.mxu0 0
      %1180 = vmatprep.subr.bf16.mxu0 0
      %1181 = vmatpush2.bf16.msra.mxu0 0
      %1182 = vmatprep.subr.bf16.mxu0 0
      %1183 = vmatpush2.bf16.msra.mxu0 0
      %1184 = vmatprep.subr.bf16.mxu0 0
      %1185 = vmatpush2.bf16.msra.mxu0 0
      %1186 = vmatprep.mubr.bf16.mxu0 0
      %1187 = vmatmul.mubr.bf16.gmra.mxu0 %v1152
      %v1188 = vpop.f32.mrf.mxu0
      %v1189 = vadd.f32 0.0, %v1188
      %v1190 = vpop.f32.mrf.mxu0
      %v1191 = vpop.f32.mrf.mxu0
      %v1192 = vpop.f32.mrf.mxu0
      %1193 = vdwg.mxu0
      %v1194 = vadd.f32 %v1111, %v1189
      %v1195 = vlaneseq
      %v1196 = vshrl.u32 %v1195, 7
      %v1197 = vsub.s32 0, %v1196
      %v1198 = vrot.slane %v960, %v1197
      %v1199 = vadd.f32 %v1194, %v1198
      %v1200 = vmul.f32 %v1199, 0.5
      %v1201 = vmul.f32 %v1199, %v1199
      %v1202 = vmul.f32 %v1201, %v1199
      %v1203 = vmul.f32 %v1202, 0.044715
      %v1204 = vadd.f32 %v1199, %v1203
      %v1205 = vmul.f32 %v1204, 0.7978846
      %v1206 = vtanh.pop %v1205
      %v1207 = vadd.f32 %v1206, 1.0
      %v1208 = vmul.f32 %v1200, %v1207
      %v1209 = vld [vmem:[%s687] ss:$2 sm:$0xf]
      %v1210 = vpack.c.bf16 %v1209, %v1209
      %v1211 = vld [vmem:[%s700] ss:$2 sm:$0xf]
      %v1212 = vpack.c.bf16 %v1211, %v1211
      %v1214 = vsel %vm281, %v1212, 0
      %1216 = vmatprep.subr.bf16.mxu0 0
      %1217 = vmatpush1.bf16.msra.mxu0 0
      %1218 = vmatprep.subr.bf16.mxu0 0
      %1219 = vmatpush1.bf16.msra.mxu0 0
      %1220 = vmatprep.subr.bf16.mxu0 0
      %1221 = vmatpush1.bf16.msra.mxu0 0
      %1222 = vmatprep.subr.bf16.mxu0 0
      %1223 = vmatpush1.bf16.msra.mxu0 0
      %1224 = vmatprep.subr.bf16.mxu0 0
      %1225 = vmatpush1.bf16.msra.mxu0 %v1001
      %1226 = vmatprep.subr.bf16.mxu0 0
      %1227 = vmatpush1.bf16.msra.mxu0 %v1000
      %1228 = vmatprep.subr.bf16.mxu0 0
      %1229 = vmatpush1.bf16.msra.mxu0 %v999
      %1230 = vmatprep.subr.bf16.mxu0 0
      %1231 = vmatpush1.bf16.msra.mxu0 %v998
      %1232 = vmatprep.subr.bf16.mxu0 0
      %1233 = vmatpush2.bf16.msra.mxu0 0
      %1234 = vmatprep.subr.bf16.mxu0 0
      %1235 = vmatpush2.bf16.msra.mxu0 0
      %1236 = vmatprep.subr.bf16.mxu0 0
      %1237 = vmatpush2.bf16.msra.mxu0 0
      %1238 = vmatprep.subr.bf16.mxu0 0
      %1239 = vmatpush2.bf16.msra.mxu0 0
      %1240 = vmatprep.subr.bf16.mxu0 0
      %1241 = vmatpush2.bf16.msra.mxu0 0
      %1242 = vmatprep.subr.bf16.mxu0 0
      %1243 = vmatpush2.bf16.msra.mxu0 0
      %1244 = vmatprep.subr.bf16.mxu0 0
      %1245 = vmatpush2.bf16.msra.mxu0 0
      %1246 = vmatprep.subr.bf16.mxu0 0
      %1247 = vmatpush2.bf16.msra.mxu0 0
      %1248 = vmatprep.mubr.bf16.mxu0 0
      %1249 = vmatmul.mubr.bf16.gmra.mxu0 %v1214
      %v1250 = vpop.f32.mrf.mxu0
      %v1251 = vadd.f32 0.0, %v1250
      %v1252 = vpop.f32.mrf.mxu0
      %v1253 = vpop.f32.mrf.mxu0
      %v1254 = vpop.f32.mrf.mxu0
      %1255 = vdwg.mxu0
      %v1257 = vsel %vm281, %v1210, 0
      %1259 = vmatprep.subr.bf16.mxu0 0
      %1260 = vmatpush1.bf16.msra.mxu0 0
      %1261 = vmatprep.subr.bf16.mxu0 0
      %1262 = vmatpush1.bf16.msra.mxu0 0
      %1263 = vmatprep.subr.bf16.mxu0 0
      %1264 = vmatpush1.bf16.msra.mxu0 0
      %1265 = vmatprep.subr.bf16.mxu0 0
      %1266 = vmatpush1.bf16.msra.mxu0 0
      %1267 = vmatprep.subr.bf16.mxu0 0
      %1268 = vmatpush1.bf16.msra.mxu0 %v1068
      %1269 = vmatprep.subr.bf16.mxu0 0
      %1270 = vmatpush1.bf16.msra.mxu0 %v1067
      %1271 = vmatprep.subr.bf16.mxu0 0
      %1272 = vmatpush1.bf16.msra.mxu0 %v1066
      %1273 = vmatprep.subr.bf16.mxu0 0
      %1274 = vmatpush1.bf16.msra.mxu0 %v1065
      %1275 = vmatprep.subr.bf16.mxu0 0
      %1276 = vmatpush2.bf16.msra.mxu0 0
      %1277 = vmatprep.subr.bf16.mxu0 0
      %1278 = vmatpush2.bf16.msra.mxu0 0
      %1279 = vmatprep.subr.bf16.mxu0 0
      %1280 = vmatpush2.bf16.msra.mxu0 0
      %1281 = vmatprep.subr.bf16.mxu0 0
      %1282 = vmatpush2.bf16.msra.mxu0 0
      %1283 = vmatprep.subr.bf16.mxu0 0
      %1284 = vmatpush2.bf16.msra.mxu0 0
      %1285 = vmatprep.subr.bf16.mxu0 0
      %1286 = vmatpush2.bf16.msra.mxu0 0
      %1287 = vmatprep.subr.bf16.mxu0 0
      %1288 = vmatpush2.bf16.msra.mxu0 0
      %1289 = vmatprep.subr.bf16.mxu0 0
      %1290 = vmatpush2.bf16.msra.mxu0 0
      %1291 = vmatprep.mubr.bf16.mxu0 0
      %1292 = vmatmul.mubr.bf16.gmra.mxu0 %v1257
      %v1293 = vpop.f32.mrf.mxu0
      %v1294 = vadd.f32 %v1251, %v1293
      %v1295 = vpop.f32.mrf.mxu0
      %v1296 = vpop.f32.mrf.mxu0
      %v1297 = vpop.f32.mrf.mxu0
      %1298 = vdwg.mxu0
      %v1299 = vld [vmem:[%s850] ss:$2 sm:$0xf]
      %v1300 = vpack.c.bf16 %v1299, %v1299
      %v1302 = vsel %vm281, %v1300, 0
      %1304 = vmatprep.subr.bf16.mxu0 0
      %1305 = vmatpush1.bf16.msra.mxu0 0
      %1306 = vmatprep.subr.bf16.mxu0 0
      %1307 = vmatpush1.bf16.msra.mxu0 0
      %1308 = vmatprep.subr.bf16.mxu0 0
      %1309 = vmatpush1.bf16.msra.mxu0 0
      %1310 = vmatprep.subr.bf16.mxu0 0
      %1311 = vmatpush1.bf16.msra.mxu0 0
      %1312 = vmatprep.subr.bf16.mxu0 0
      %1313 = vmatpush1.bf16.msra.mxu0 %v1146
      %1314 = vmatprep.subr.bf16.mxu0 0
      %1315 = vmatpush1.bf16.msra.mxu0 %v1145
      %1316 = vmatprep.subr.bf16.mxu0 0
      %1317 = vmatpush1.bf16.msra.mxu0 %v1144
      %1318 = vmatprep.subr.bf16.mxu0 0
      %1319 = vmatpush1.bf16.msra.mxu0 %v1143
      %1320 = vmatprep.subr.bf16.mxu0 0
      %1321 = vmatpush2.bf16.msra.mxu0 0
      %1322 = vmatprep.subr.bf16.mxu0 0
      %1323 = vmatpush2.bf16.msra.mxu0 0
      %1324 = vmatprep.subr.bf16.mxu0 0
      %1325 = vmatpush2.bf16.msra.mxu0 0
      %1326 = vmatprep.subr.bf16.mxu0 0
      %1327 = vmatpush2.bf16.msra.mxu0 0
      %1328 = vmatprep.subr.bf16.mxu0 0
      %1329 = vmatpush2.bf16.msra.mxu0 0
      %1330 = vmatprep.subr.bf16.mxu0 0
      %1331 = vmatpush2.bf16.msra.mxu0 0
      %1332 = vmatprep.subr.bf16.mxu0 0
      %1333 = vmatpush2.bf16.msra.mxu0 0
      %1334 = vmatprep.subr.bf16.mxu0 0
      %1335 = vmatpush2.bf16.msra.mxu0 0
      %1336 = vmatprep.mubr.bf16.mxu0 0
      %1337 = vmatmul.mubr.bf16.gmra.mxu0 %v1302
      %v1338 = vpop.f32.mrf.mxu0
      %v1339 = vadd.f32 0.0, %v1338
      %v1340 = vpop.f32.mrf.mxu0
      %v1341 = vpop.f32.mrf.mxu0
      %v1342 = vpop.f32.mrf.mxu0
      %1343 = vdwg.mxu0
      %v1344 = vadd.f32 %v1294, %v1339
      %v1345 = vadd.f32 %v1344, %v1198
      %v1346 = vmul.f32 %v1345, 0.5
      %v1347 = vmul.f32 %v1345, %v1345
      %v1348 = vmul.f32 %v1347, %v1345
      %v1349 = vmul.f32 %v1348, 0.044715
      %v1350 = vadd.f32 %v1345, %v1349
      %v1351 = vmul.f32 %v1350, 0.7978846
      %v1352 = vtanh.pop %v1351
      %v1353 = vadd.f32 %v1352, 1.0
      %v1354 = vmul.f32 %v1346, %v1353
      %vm1355 = vcmask 519168
      %1356 = vst.msk [vmem:[#allocation2 + $0x1] sm:$0xf] %vm1355, %v1208
      %1357 = vst.msk [vmem:[#allocation2 + $0x5] sm:$0x1] %vm680, 0.0
      %1358 = vst.msk [vmem:[#allocation2 + $0x19] sm:$0xf] %vm1355, %v1354
      %1359 = vst.msk [vmem:[#allocation2 + $0x1d] sm:$0x1] %vm680, 0.0
      %v1360 = vld [vmem:[%s5 + $0x3] sm:$0x1]
      %v1361 = vld [vmem:[#allocation2] ss:$2 sm:$0x3]
      %v1362 = vpack.c.bf16 %v1361, %v1361
      %v1363 = vld [vmem:[%s4] sm:$0xf]
      %v1364 = vld [vmem:[%s4 + $0x4] sm:$0xf]
      %v1365 = vld [vmem:[%s4 + $0x8] sm:$0xf]
      %v1366 = vld [vmem:[%s4 + $0xc] sm:$0xf]
      %v1367 = vld [vmem:[%s4 + $0x10] sm:$0xf]
      %v1368 = vld [vmem:[%s4 + $0x14] sm:$0xf]
      %v1369 = vld [vmem:[%s4 + $0x18] sm:$0xf]
      %v1370 = vld [vmem:[%s4 + $0x1c] sm:$0xf]
      %v1371 = vld [vmem:[%s698] ss:$2 sm:$0x3]
      %v1372 = vpack.c.bf16 %v1371, %v1371
      %s1373 = scalar_lea.vmem %s4, 32
      %v1374 = vld [vmem:[%s1373] sm:$0xf]
      %v1375 = vld [vmem:[%s1373 + $0x4] sm:$0xf]
      %v1376 = vld [vmem:[%s1373 + $0x8] sm:$0xf]
      %v1377 = vld [vmem:[%s1373 + $0xc] sm:$0xf]
      %v1378 = vld [vmem:[%s1373 + $0x10] sm:$0xf]
      %v1379 = vld [vmem:[%s1373 + $0x14] sm:$0xf]
      %v1380 = vld [vmem:[%s1373 + $0x18] sm:$0xf]
      %v1381 = vld [vmem:[%s1373 + $0x1c] sm:$0xf]
      %v1390 = vunpack.c.l.b16 %v1374
      %v1391 = vunpack.c.l.b16 %v1375
      %v1392 = vunpack.c.l.b16 %v1376
      %v1393 = vunpack.c.l.b16 %v1377
      %v1394 = vunpack.c.l.b16 %v1378
      %v1395 = vunpack.c.l.b16 %v1379
      %v1396 = vunpack.c.l.b16 %v1380
      %v1397 = vunpack.c.l.b16 %v1381
      %v1398 = vpack.c.b16 %v1391, %v1390
      %v1399 = vpack.c.b16 %v1393, %v1392
      %v1400 = vpack.c.b16 %v1395, %v1394
      %v1401 = vpack.c.b16 %v1397, %v1396
      %v1407 = vsel %vm281, %v1372, 0
      %1409 = vmatprep.subr.bf16.mxu0 0
      %1410 = vmatpush1.bf16.msra.mxu0 0
      %1411 = vmatprep.subr.bf16.mxu0 0
      %1412 = vmatpush1.bf16.msra.mxu0 0
      %1413 = vmatprep.subr.bf16.mxu0 0
      %1414 = vmatpush1.bf16.msra.mxu0 0
      %1415 = vmatprep.subr.bf16.mxu0 0
      %1416 = vmatpush1.bf16.msra.mxu0 0
      %1417 = vmatprep.subr.bf16.mxu0 0
      %1418 = vmatpush1.bf16.msra.mxu0 %v1401
      %1419 = vmatprep.subr.bf16.mxu0 0
      %1420 = vmatpush1.bf16.msra.mxu0 %v1400
      %1421 = vmatprep.subr.bf16.mxu0 0
      %1422 = vmatpush1.bf16.msra.mxu0 %v1399
      %1423 = vmatprep.subr.bf16.mxu0 0
      %1424 = vmatpush1.bf16.msra.mxu0 %v1398
      %1425 = vmatprep.subr.bf16.mxu0 0
      %1426 = vmatpush2.bf16.msra.mxu0 0
      %1427 = vmatprep.subr.bf16.mxu0 0
      %1428 = vmatpush2.bf16.msra.mxu0 0
      %1429 = vmatprep.subr.bf16.mxu0 0
      %1430 = vmatpush2.bf16.msra.mxu0 0
      %1431 = vmatprep.subr.bf16.mxu0 0
      %1432 = vmatpush2.bf16.msra.mxu0 0
      %1433 = vmatprep.subr.bf16.mxu0 0
      %1434 = vmatpush2.bf16.msra.mxu0 0
      %1435 = vmatprep.subr.bf16.mxu0 0
      %1436 = vmatpush2.bf16.msra.mxu0 0
      %1437 = vmatprep.subr.bf16.mxu0 0
      %1438 = vmatpush2.bf16.msra.mxu0 0
      %1439 = vmatprep.subr.bf16.mxu0 0
      %1440 = vmatpush2.bf16.msra.mxu0 0
      %1441 = vmatprep.mubr.bf16.mxu0 0
      %1442 = vmatmul.mubr.bf16.gmra.mxu0 %v1407
      %v1443 = vpop.f32.mrf.mxu0
      %v1444 = vadd.f32 0.0, %v1443
      %v1445 = vpop.f32.mrf.mxu0
      %v1446 = vpop.f32.mrf.mxu0
      %v1447 = vpop.f32.mrf.mxu0
      %1448 = vdwg.mxu0
      %v1457 = vunpack.c.l.b16 %v1363
      %v1458 = vunpack.c.l.b16 %v1364
      %v1459 = vunpack.c.l.b16 %v1365
      %v1460 = vunpack.c.l.b16 %v1366
      %v1461 = vunpack.c.l.b16 %v1367
      %v1462 = vunpack.c.l.b16 %v1368
      %v1463 = vunpack.c.l.b16 %v1369
      %v1464 = vunpack.c.l.b16 %v1370
      %v1465 = vpack.c.b16 %v1458, %v1457
      %v1466 = vpack.c.b16 %v1460, %v1459
      %v1467 = vpack.c.b16 %v1462, %v1461
      %v1468 = vpack.c.b16 %v1464, %v1463
      %v1474 = vsel %vm281, %v1362, 0
      %1476 = vmatprep.subr.bf16.mxu0 0
      %1477 = vmatpush1.bf16.msra.mxu0 0
      %1478 = vmatprep.subr.bf16.mxu0 0
      %1479 = vmatpush1.bf16.msra.mxu0 0
      %1480 = vmatprep.subr.bf16.mxu0 0
      %1481 = vmatpush1.bf16.msra.mxu0 0
      %1482 = vmatprep.subr.bf16.mxu0 0
      %1483 = vmatpush1.bf16.msra.mxu0 0
      %1484 = vmatprep.subr.bf16.mxu0 0
      %1485 = vmatpush1.bf16.msra.mxu0 %v1468
      %1486 = vmatprep.subr.bf16.mxu0 0
      %1487 = vmatpush1.bf16.msra.mxu0 %v1467
      %1488 = vmatprep.subr.bf16.mxu0 0
      %1489 = vmatpush1.bf16.msra.mxu0 %v1466
      %1490 = vmatprep.subr.bf16.mxu0 0
      %1491 = vmatpush1.bf16.msra.mxu0 %v1465
      %1492 = vmatprep.subr.bf16.mxu0 0
      %1493 = vmatpush2.bf16.msra.mxu0 0
      %1494 = vmatprep.subr.bf16.mxu0 0
      %1495 = vmatpush2.bf16.msra.mxu0 0
      %1496 = vmatprep.subr.bf16.mxu0 0
      %1497 = vmatpush2.bf16.msra.mxu0 0
      %1498 = vmatprep.subr.bf16.mxu0 0
      %1499 = vmatpush2.bf16.msra.mxu0 0
      %1500 = vmatprep.subr.bf16.mxu0 0
      %1501 = vmatpush2.bf16.msra.mxu0 0
      %1502 = vmatprep.subr.bf16.mxu0 0
      %1503 = vmatpush2.bf16.msra.mxu0 0
      %1504 = vmatprep.subr.bf16.mxu0 0
      %1505 = vmatpush2.bf16.msra.mxu0 0
      %1506 = vmatprep.subr.bf16.mxu0 0
      %1507 = vmatpush2.bf16.msra.mxu0 0
      %1508 = vmatprep.mubr.bf16.mxu0 0
      %1509 = vmatmul.mubr.bf16.gmra.mxu0 %v1474
      %v1510 = vpop.f32.mrf.mxu0
      %v1511 = vadd.f32 %v1444, %v1510
      %v1512 = vpop.f32.mrf.mxu0
      %v1513 = vpop.f32.mrf.mxu0
      %v1514 = vpop.f32.mrf.mxu0
      %1515 = vdwg.mxu0
      %v1516 = vld [vmem:[%s848] ss:$2 sm:$0x3]
      %v1517 = vpack.c.bf16 %v1516, %v1516
      %s1518 = scalar_lea.vmem %s4, 64
      %v1519 = vld [vmem:[%s1518] sm:$0xf]
      %v1520 = vld [vmem:[%s1518 + $0x4] sm:$0xf]
      %v1521 = vld [vmem:[%s1518 + $0x8] sm:$0xf]
      %v1522 = vld [vmem:[%s1518 + $0xc] sm:$0xf]
      %v1523 = vld [vmem:[%s1518 + $0x10] sm:$0xf]
      %v1524 = vld [vmem:[%s1518 + $0x14] sm:$0xf]
      %v1525 = vld [vmem:[%s1518 + $0x18] sm:$0xf]
      %v1526 = vld [vmem:[%s1518 + $0x1c] sm:$0xf]
      %v1535 = vunpack.c.l.b16 %v1519
      %v1536 = vunpack.c.l.b16 %v1520
      %v1537 = vunpack.c.l.b16 %v1521
      %v1538 = vunpack.c.l.b16 %v1522
      %v1539 = vunpack.c.l.b16 %v1523
      %v1540 = vunpack.c.l.b16 %v1524
      %v1541 = vunpack.c.l.b16 %v1525
      %v1542 = vunpack.c.l.b16 %v1526
      %v1543 = vpack.c.b16 %v1536, %v1535
      %v1544 = vpack.c.b16 %v1538, %v1537
      %v1545 = vpack.c.b16 %v1540, %v1539
      %v1546 = vpack.c.b16 %v1542, %v1541
      %v1552 = vsel %vm281, %v1517, 0
      %1554 = vmatprep.subr.bf16.mxu0 0
      %1555 = vmatpush1.bf16.msra.mxu0 0
      %1556 = vmatprep.subr.bf16.mxu0 0
      %1557 = vmatpush1.bf16.msra.mxu0 0
      %1558 = vmatprep.subr.bf16.mxu0 0
      %1559 = vmatpush1.bf16.msra.mxu0 0
      %1560 = vmatprep.subr.bf16.mxu0 0
      %1561 = vmatpush1.bf16.msra.mxu0 0
      %1562 = vmatprep.subr.bf16.mxu0 0
      %1563 = vmatpush1.bf16.msra.mxu0 %v1546
      %1564 = vmatprep.subr.bf16.mxu0 0
      %1565 = vmatpush1.bf16.msra.mxu0 %v1545
      %1566 = vmatprep.subr.bf16.mxu0 0
      %1567 = vmatpush1.bf16.msra.mxu0 %v1544
      %1568 = vmatprep.subr.bf16.mxu0 0
      %1569 = vmatpush1.bf16.msra.mxu0 %v1543
      %1570 = vmatprep.subr.bf16.mxu0 0
      %1571 = vmatpush2.bf16.msra.mxu0 0
      %1572 = vmatprep.subr.bf16.mxu0 0
      %1573 = vmatpush2.bf16.msra.mxu0 0
      %1574 = vmatprep.subr.bf16.mxu0 0
      %1575 = vmatpush2.bf16.msra.mxu0 0
      %1576 = vmatprep.subr.bf16.mxu0 0
      %1577 = vmatpush2.bf16.msra.mxu0 0
      %1578 = vmatprep.subr.bf16.mxu0 0
      %1579 = vmatpush2.bf16.msra.mxu0 0
      %1580 = vmatprep.subr.bf16.mxu0 0
      %1581 = vmatpush2.bf16.msra.mxu0 0
      %1582 = vmatprep.subr.bf16.mxu0 0
      %1583 = vmatpush2.bf16.msra.mxu0 0
      %1584 = vmatprep.subr.bf16.mxu0 0
      %1585 = vmatpush2.bf16.msra.mxu0 0
      %1586 = vmatprep.mubr.bf16.mxu0 0
      %1587 = vmatmul.mubr.bf16.gmra.mxu0 %v1552
      %v1588 = vpop.f32.mrf.mxu0
      %v1589 = vadd.f32 0.0, %v1588
      %v1590 = vpop.f32.mrf.mxu0
      %v1591 = vpop.f32.mrf.mxu0
      %v1592 = vpop.f32.mrf.mxu0
      %1593 = vdwg.mxu0
      %v1594 = vadd.f32 %v1511, %v1589
      %v1595 = vlaneseq
      %v1596 = vshrl.u32 %v1595, 7
      %v1597 = vsub.s32 0, %v1596
      %v1598 = vrot.slane %v1360, %v1597
      %v1599 = vadd.f32 %v1594, %v1598
      %v1600 = vld [vmem:[%s687] ss:$2 sm:$0x3]
      %v1601 = vpack.c.bf16 %v1600, %v1600
      %v1602 = vld [vmem:[%s700] ss:$2 sm:$0x3]
      %v1603 = vpack.c.bf16 %v1602, %v1602
      %v1605 = vsel %vm281, %v1603, 0
      %1607 = vmatprep.subr.bf16.mxu0 0
      %1608 = vmatpush1.bf16.msra.mxu0 0
      %1609 = vmatprep.subr.bf16.mxu0 0
      %1610 = vmatpush1.bf16.msra.mxu0 0
      %1611 = vmatprep.subr.bf16.mxu0 0
      %1612 = vmatpush1.bf16.msra.mxu0 0
      %1613 = vmatprep.subr.bf16.mxu0 0
      %1614 = vmatpush1.bf16.msra.mxu0 0
      %1615 = vmatprep.subr.bf16.mxu0 0
      %1616 = vmatpush1.bf16.msra.mxu0 %v1401
      %1617 = vmatprep.subr.bf16.mxu0 0
      %1618 = vmatpush1.bf16.msra.mxu0 %v1400
      %1619 = vmatprep.subr.bf16.mxu0 0
      %1620 = vmatpush1.bf16.msra.mxu0 %v1399
      %1621 = vmatprep.subr.bf16.mxu0 0
      %1622 = vmatpush1.bf16.msra.mxu0 %v1398
      %1623 = vmatprep.subr.bf16.mxu0 0
      %1624 = vmatpush2.bf16.msra.mxu0 0
      %1625 = vmatprep.subr.bf16.mxu0 0
      %1626 = vmatpush2.bf16.msra.mxu0 0
      %1627 = vmatprep.subr.bf16.mxu0 0
      %1628 = vmatpush2.bf16.msra.mxu0 0
      %1629 = vmatprep.subr.bf16.mxu0 0
      %1630 = vmatpush2.bf16.msra.mxu0 0
      %1631 = vmatprep.subr.bf16.mxu0 0
      %1632 = vmatpush2.bf16.msra.mxu0 0
      %1633 = vmatprep.subr.bf16.mxu0 0
      %1634 = vmatpush2.bf16.msra.mxu0 0
      %1635 = vmatprep.subr.bf16.mxu0 0
      %1636 = vmatpush2.bf16.msra.mxu0 0
      %1637 = vmatprep.subr.bf16.mxu0 0
      %1638 = vmatpush2.bf16.msra.mxu0 0
      %1639 = vmatprep.mubr.bf16.mxu0 0
      %1640 = vmatmul.mubr.bf16.gmra.mxu0 %v1605
      %v1641 = vpop.f32.mrf.mxu0
      %v1642 = vadd.f32 0.0, %v1641
      %v1643 = vpop.f32.mrf.mxu0
      %v1644 = vpop.f32.mrf.mxu0
      %v1645 = vpop.f32.mrf.mxu0
      %1646 = vdwg.mxu0
      %v1648 = vsel %vm281, %v1601, 0
      %1650 = vmatprep.subr.bf16.mxu0 0
      %1651 = vmatpush1.bf16.msra.mxu0 0
      %1652 = vmatprep.subr.bf16.mxu0 0
      %1653 = vmatpush1.bf16.msra.mxu0 0
      %1654 = vmatprep.subr.bf16.mxu0 0
      %1655 = vmatpush1.bf16.msra.mxu0 0
      %1656 = vmatprep.subr.bf16.mxu0 0
      %1657 = vmatpush1.bf16.msra.mxu0 0
      %1658 = vmatprep.subr.bf16.mxu0 0
      %1659 = vmatpush1.bf16.msra.mxu0 %v1468
      %1660 = vmatprep.subr.bf16.mxu0 0
      %1661 = vmatpush1.bf16.msra.mxu0 %v1467
      %1662 = vmatprep.subr.bf16.mxu0 0
      %1663 = vmatpush1.bf16.msra.mxu0 %v1466
      %1664 = vmatprep.subr.bf16.mxu0 0
      %1665 = vmatpush1.bf16.msra.mxu0 %v1465
      %1666 = vmatprep.subr.bf16.mxu0 0
      %1667 = vmatpush2.bf16.msra.mxu0 0
      %1668 = vmatprep.subr.bf16.mxu0 0
      %1669 = vmatpush2.bf16.msra.mxu0 0
      %1670 = vmatprep.subr.bf16.mxu0 0
      %1671 = vmatpush2.bf16.msra.mxu0 0
      %1672 = vmatprep.subr.bf16.mxu0 0
      %1673 = vmatpush2.bf16.msra.mxu0 0
      %1674 = vmatprep.subr.bf16.mxu0 0
      %1675 = vmatpush2.bf16.msra.mxu0 0
      %1676 = vmatprep.subr.bf16.mxu0 0
      %1677 = vmatpush2.bf16.msra.mxu0 0
      %1678 = vmatprep.subr.bf16.mxu0 0
      %1679 = vmatpush2.bf16.msra.mxu0 0
      %1680 = vmatprep.subr.bf16.mxu0 0
      %1681 = vmatpush2.bf16.msra.mxu0 0
      %1682 = vmatprep.mubr.bf16.mxu0 0
      %1683 = vmatmul.mubr.bf16.gmra.mxu0 %v1648
      %v1684 = vpop.f32.mrf.mxu0
      %v1685 = vadd.f32 %v1642, %v1684
      %v1686 = vpop.f32.mrf.mxu0
      %v1687 = vpop.f32.mrf.mxu0
      %v1688 = vpop.f32.mrf.mxu0
      %1689 = vdwg.mxu0
      %v1690 = vld [vmem:[%s850] ss:$2 sm:$0x3]
      %v1691 = vpack.c.bf16 %v1690, %v1690
      %v1693 = vsel %vm281, %v1691, 0
      %1695 = vmatprep.subr.bf16.mxu0 0
      %1696 = vmatpush1.bf16.msra.mxu0 0
      %1697 = vmatprep.subr.bf16.mxu0 0
      %1698 = vmatpush1.bf16.msra.mxu0 0
      %1699 = vmatprep.subr.bf16.mxu0 0
      %1700 = vmatpush1.bf16.msra.mxu0 0
      %1701 = vmatprep.subr.bf16.mxu0 0
      %1702 = vmatpush1.bf16.msra.mxu0 0
      %1703 = vmatprep.subr.bf16.mxu0 0
      %1704 = vmatpush1.bf16.msra.mxu0 %v1546
      %1705 = vmatprep.subr.bf16.mxu0 0
      %1706 = vmatpush1.bf16.msra.mxu0 %v1545
      %1707 = vmatprep.subr.bf16.mxu0 0
      %1708 = vmatpush1.bf16.msra.mxu0 %v1544
      %1709 = vmatprep.subr.bf16.mxu0 0
      %1710 = vmatpush1.bf16.msra.mxu0 %v1543
      %1711 = vmatprep.subr.bf16.mxu0 0
      %1712 = vmatpush2.bf16.msra.mxu0 0
      %1713 = vmatprep.subr.bf16.mxu0 0
      %1714 = vmatpush2.bf16.msra.mxu0 0
      %1715 = vmatprep.subr.bf16.mxu0 0
      %1716 = vmatpush2.bf16.msra.mxu0 0
      %1717 = vmatprep.subr.bf16.mxu0 0
      %1718 = vmatpush2.bf16.msra.mxu0 0
      %1719 = vmatprep.subr.bf16.mxu0 0
      %1720 = vmatpush2.bf16.msra.mxu0 0
      %1721 = vmatprep.subr.bf16.mxu0 0
      %1722 = vmatpush2.bf16.msra.mxu0 0
      %1723 = vmatprep.subr.bf16.mxu0 0
      %1724 = vmatpush2.bf16.msra.mxu0 0
      %1725 = vmatprep.subr.bf16.mxu0 0
      %1726 = vmatpush2.bf16.msra.mxu0 0
      %1727 = vmatprep.mubr.bf16.mxu0 0
      %1728 = vmatmul.mubr.bf16.gmra.mxu0 %v1693
      %v1729 = vpop.f32.mrf.mxu0
      %v1730 = vadd.f32 0.0, %v1729
      %v1731 = vpop.f32.mrf.mxu0
      %v1732 = vpop.f32.mrf.mxu0
      %v1733 = vpop.f32.mrf.mxu0
      %1734 = vdwg.mxu0
      %v1735 = vadd.f32 %v1685, %v1730
      %v1736 = vadd.f32 %v1735, %v1598
      %v1737 = vpack.c.bf16 %v1599, %v1599
      %v1738 = vld [vmem:[%s6] sm:$0xf]
      %v1739 = vld [vmem:[%s6 + $0x4] sm:$0xf]
      %v1740 = vld [vmem:[%s6 + $0x8] sm:$0xf]
      %v1741 = vld [vmem:[%s6 + $0xc] sm:$0xf]
      %v1742 = vld [vmem:[%s6 + $0x10] sm:$0xf]
      %v1743 = vld [vmem:[%s6 + $0x14] sm:$0xf]
      %v1744 = vld [vmem:[%s6 + $0x18] sm:$0xf]
      %v1745 = vld [vmem:[%s6 + $0x1c] sm:$0xf]
      %v1754 = vunpack.c.l.b16 %v1738
      %v1755 = vunpack.c.l.b16 %v1739
      %v1756 = vunpack.c.l.b16 %v1740
      %v1757 = vunpack.c.l.b16 %v1741
      %v1758 = vunpack.c.l.b16 %v1742
      %v1759 = vunpack.c.l.b16 %v1743
      %v1760 = vunpack.c.l.b16 %v1744
      %v1761 = vunpack.c.l.b16 %v1745
      %v1762 = vpack.c.b16 %v1755, %v1754
      %v1763 = vpack.c.b16 %v1757, %v1756
      %v1764 = vpack.c.b16 %v1759, %v1758
      %v1765 = vpack.c.b16 %v1761, %v1760
      %v1771 = vsel %vm281, %v1737, 0
      %1773 = vmatprep.subr.bf16.mxu0 0
      %1774 = vmatpush1.bf16.msra.mxu0 0
      %1775 = vmatprep.subr.bf16.mxu0 0
      %1776 = vmatpush1.bf16.msra.mxu0 0
      %1777 = vmatprep.subr.bf16.mxu0 0
      %1778 = vmatpush1.bf16.msra.mxu0 0
      %1779 = vmatprep.subr.bf16.mxu0 0
      %1780 = vmatpush1.bf16.msra.mxu0 0
      %1781 = vmatprep.subr.bf16.mxu0 0
      %1782 = vmatpush1.bf16.msra.mxu0 %v1765
      %1783 = vmatprep.subr.bf16.mxu0 0
      %1784 = vmatpush1.bf16.msra.mxu0 %v1764
      %1785 = vmatprep.subr.bf16.mxu0 0
      %1786 = vmatpush1.bf16.msra.mxu0 %v1763
      %1787 = vmatprep.subr.bf16.mxu0 0
      %1788 = vmatpush1.bf16.msra.mxu0 %v1762
      %1789 = vmatprep.subr.bf16.mxu0 0
      %1790 = vmatpush2.bf16.msra.mxu0 0
      %1791 = vmatprep.subr.bf16.mxu0 0
      %1792 = vmatpush2.bf16.msra.mxu0 0
      %1793 = vmatprep.subr.bf16.mxu0 0
      %1794 = vmatpush2.bf16.msra.mxu0 0
      %1795 = vmatprep.subr.bf16.mxu0 0
      %1796 = vmatpush2.bf16.msra.mxu0 0
      %1797 = vmatprep.subr.bf16.mxu0 0
      %1798 = vmatpush2.bf16.msra.mxu0 0
      %1799 = vmatprep.subr.bf16.mxu0 0
      %1800 = vmatpush2.bf16.msra.mxu0 0
      %1801 = vmatprep.subr.bf16.mxu0 0
      %1802 = vmatpush2.bf16.msra.mxu0 0
      %1803 = vmatprep.subr.bf16.mxu0 0
      %1804 = vmatpush2.bf16.msra.mxu0 0
      %1805 = vmatprep.mubr.bf16.mxu0 0
      %1806 = vmatmul.mubr.bf16.gmra.mxu0 %v1771
      %v1807 = vpop.f32.mrf.mxu0
      %v1808 = vadd.f32 0.0, %v1807
      %v1809 = vpop.f32.mrf.mxu0
      %v1810 = vpop.f32.mrf.mxu0
      %v1811 = vpop.f32.mrf.mxu0
      %1812 = vdwg.mxu0
      %s1813 = scalar_lea.vmem %s6, 32
      %v1814 = vld [vmem:[%s1813] sm:$0xf]
      %v1815 = vld [vmem:[%s1813 + $0x4] sm:$0xf]
      %v1816 = vld [vmem:[%s1813 + $0x8] sm:$0xf]
      %v1817 = vld [vmem:[%s1813 + $0xc] sm:$0xf]
      %v1818 = vld [vmem:[%s1813 + $0x10] sm:$0xf]
      %v1819 = vld [vmem:[%s1813 + $0x14] sm:$0xf]
      %v1820 = vld [vmem:[%s1813 + $0x18] sm:$0xf]
      %v1821 = vld [vmem:[%s1813 + $0x1c] sm:$0xf]
      %v1830 = vunpack.c.l.b16 %v1814
      %v1831 = vunpack.c.l.b16 %v1815
      %v1832 = vunpack.c.l.b16 %v1816
      %v1833 = vunpack.c.l.b16 %v1817
      %v1834 = vunpack.c.l.b16 %v1818
      %v1835 = vunpack.c.l.b16 %v1819
      %v1836 = vunpack.c.l.b16 %v1820
      %v1837 = vunpack.c.l.b16 %v1821
      %v1838 = vpack.c.b16 %v1831, %v1830
      %v1839 = vpack.c.b16 %v1833, %v1832
      %v1840 = vpack.c.b16 %v1835, %v1834
      %v1841 = vpack.c.b16 %v1837, %v1836
      %1846 = vmatprep.subr.bf16.mxu0 0
      %1847 = vmatpush1.bf16.msra.mxu0 0
      %1848 = vmatprep.subr.bf16.mxu0 0
      %1849 = vmatpush1.bf16.msra.mxu0 0
      %1850 = vmatprep.subr.bf16.mxu0 0
      %1851 = vmatpush1.bf16.msra.mxu0 0
      %1852 = vmatprep.subr.bf16.mxu0 0
      %1853 = vmatpush1.bf16.msra.mxu0 0
      %1854 = vmatprep.subr.bf16.mxu0 0
      %1855 = vmatpush1.bf16.msra.mxu0 %v1841
      %1856 = vmatprep.subr.bf16.mxu0 0
      %1857 = vmatpush1.bf16.msra.mxu0 %v1840
      %1858 = vmatprep.subr.bf16.mxu0 0
      %1859 = vmatpush1.bf16.msra.mxu0 %v1839
      %1860 = vmatprep.subr.bf16.mxu0 0
      %1861 = vmatpush1.bf16.msra.mxu0 %v1838
      %1862 = vmatprep.subr.bf16.mxu0 0
      %1863 = vmatpush2.bf16.msra.mxu0 0
      %1864 = vmatprep.subr.bf16.mxu0 0
      %1865 = vmatpush2.bf16.msra.mxu0 0
      %1866 = vmatprep.subr.bf16.mxu0 0
      %1867 = vmatpush2.bf16.msra.mxu0 0
      %1868 = vmatprep.subr.bf16.mxu0 0
      %1869 = vmatpush2.bf16.msra.mxu0 0
      %1870 = vmatprep.subr.bf16.mxu0 0
      %1871 = vmatpush2.bf16.msra.mxu0 0
      %1872 = vmatprep.subr.bf16.mxu0 0
      %1873 = vmatpush2.bf16.msra.mxu0 0
      %1874 = vmatprep.subr.bf16.mxu0 0
      %1875 = vmatpush2.bf16.msra.mxu0 0
      %1876 = vmatprep.subr.bf16.mxu0 0
      %1877 = vmatpush2.bf16.msra.mxu0 0
      %1878 = vmatprep.mubr.bf16.mxu0 0
      %1879 = vmatmul.mubr.bf16.gmra.mxu0 %v1771
      %v1880 = vpop.f32.mrf.mxu0
      %v1881 = vadd.f32 0.0, %v1880
      %v1882 = vpop.f32.mrf.mxu0
      %v1883 = vpop.f32.mrf.mxu0
      %v1884 = vpop.f32.mrf.mxu0
      %1885 = vdwg.mxu0
      %vm1886 = vcmask 123904
      %v1887 = vsel %vm1886, %v1808, -inf
      %v1888 = vrot.slane %v1887, 4
      %v1889 = vmax.f32 %v1887, %v1888
      %v1890 = vrot.slane %v1889, 2
      %v1891 = vmax.f32 %v1889, %v1890
      %v1892 = vrot.slane %v1891, 1
      %v1893 = vmax.f32 %v1891, %v1892
      %v1894 = vsel %vm1886, %v1881, -inf
      %v1895 = vrot.slane %v1894, 4
      %v1896 = vmax.f32 %v1894, %v1895
      %v1897 = vrot.slane %v1896, 2
      %v1898 = vmax.f32 %v1896, %v1897
      %v1899 = vrot.slane %v1898, 1
      %v1900 = vmax.f32 %v1898, %v1899
      %v1901 = vmax.f32 %v1893, %v1900
      %v1902 = vsub.f32 %v1808, %v1901
      %v1903 = vmul.f32 %v1902, 1.442695
      %v1904 = vpow.pop %v1903
      %v1905 = vsel %vm1886, %v1904, 0.0
      %v1906 = vrot.slane %v1905, 4
      %v1907 = vadd.f32 %v1905, %v1906
      %v1908 = vrot.slane %v1907, 2
      %v1909 = vadd.f32 %v1907, %v1908
      %v1910 = vrot.slane %v1909, 1
      %v1911 = vadd.f32 %v1909, %v1910
      %1913 = vset.pattern.permute.xlu0 16
      %1914 = vperm.xlu0 %1913, %v1808
      %v1915 = vpop.permute.xlu0 %1914
      %v1917 = vmul.f32 %v1904, %v1915
      %v1918 = vsel %vm1886, %v1917, 0.0
      %v1919 = vrot.slane %v1918, 4
      %v1920 = vadd.f32 %v1918, %v1919
      %v1921 = vrot.slane %v1920, 2
      %v1922 = vadd.f32 %v1920, %v1921
      %v1923 = vrot.slane %v1922, 1
      %v1924 = vadd.f32 %v1922, %v1923
      %v1925 = vsub.f32 %v1881, %v1901
      %v1926 = vmul.f32 %v1925, 1.442695
      %v1927 = vpow.pop %v1926
      %v1928 = vsel %vm1886, %v1927, 0.0
      %v1929 = vrot.slane %v1928, 4
      %v1930 = vadd.f32 %v1928, %v1929
      %v1931 = vrot.slane %v1930, 2
      %v1932 = vadd.f32 %v1930, %v1931
      %v1933 = vrot.slane %v1932, 1
      %v1934 = vadd.f32 %v1932, %v1933
      %1936 = vset.pattern.permute.xlu0 16
      %1937 = vperm.xlu0 %1936, %v1881
      %v1938 = vpop.permute.xlu0 %1937
      %v1940 = vmul.f32 %v1927, %v1938
      %v1941 = vsel %vm1886, %v1940, 0.0
      %v1942 = vrot.slane %v1941, 4
      %v1943 = vadd.f32 %v1941, %v1942
      %v1944 = vrot.slane %v1943, 2
      %v1945 = vadd.f32 %v1943, %v1944
      %v1946 = vrot.slane %v1945, 1
      %v1947 = vadd.f32 %v1945, %v1946
      %v1948 = vadd.f32 %v1911, %v1934
      %v1949 = vadd.f32 %v1924, %v1947
      %v1950 = vrcp.pop %v1948
      %v1951 = vmul.f32 %v1949, %v1950
      %vm1952 = vcmask 122880
      %1953 = vst.msk [vmem:[%s278] sm:$0x1] %vm1952, %v1951
      %v1954 = vpack.c.bf16 %v1736, %v1736
      %v1955 = vld [vmem:[%s6] sm:$0xf]
      %v1956 = vld [vmem:[%s6 + $0x4] sm:$0xf]
      %v1957 = vld [vmem:[%s6 + $0x8] sm:$0xf]
      %v1958 = vld [vmem:[%s6 + $0xc] sm:$0xf]
      %v1959 = vld [vmem:[%s6 + $0x10] sm:$0xf]
      %v1960 = vld [vmem:[%s6 + $0x14] sm:$0xf]
      %v1961 = vld [vmem:[%s6 + $0x18] sm:$0xf]
      %v1962 = vld [vmem:[%s6 + $0x1c] sm:$0xf]
      %v1971 = vunpack.c.l.b16 %v1955
      %v1972 = vunpack.c.l.b16 %v1956
      %v1973 = vunpack.c.l.b16 %v1957
      %v1974 = vunpack.c.l.b16 %v1958
      %v1975 = vunpack.c.l.b16 %v1959
      %v1976 = vunpack.c.l.b16 %v1960
      %v1977 = vunpack.c.l.b16 %v1961
      %v1978 = vunpack.c.l.b16 %v1962
      %v1979 = vpack.c.b16 %v1972, %v1971
      %v1980 = vpack.c.b16 %v1974, %v1973
      %v1981 = vpack.c.b16 %v1976, %v1975
      %v1982 = vpack.c.b16 %v1978, %v1977
      %v1988 = vsel %vm281, %v1954, 0
      %1990 = vmatprep.subr.bf16.mxu0 0
      %1991 = vmatpush1.bf16.msra.mxu0 0
      %1992 = vmatprep.subr.bf16.mxu0 0
      %1993 = vmatpush1.bf16.msra.mxu0 0
      %1994 = vmatprep.subr.bf16.mxu0 0
      %1995 = vmatpush1.bf16.msra.mxu0 0
      %1996 = vmatprep.subr.bf16.mxu0 0
      %1997 = vmatpush1.bf16.msra.mxu0 0
      %1998 = vmatprep.subr.bf16.mxu0 0
      %1999 = vmatpush1.bf16.msra.mxu0 %v1982
      %2000 = vmatprep.subr.bf16.mxu0 0
      %2001 = vmatpush1.bf16.msra.mxu0 %v1981
      %2002 = vmatprep.subr.bf16.mxu0 0
      %2003 = vmatpush1.bf16.msra.mxu0 %v1980
      %2004 = vmatprep.subr.bf16.mxu0 0
      %2005 = vmatpush1.bf16.msra.mxu0 %v1979
      %2006 = vmatprep.subr.bf16.mxu0 0
      %2007 = vmatpush2.bf16.msra.mxu0 0
      %2008 = vmatprep.subr.bf16.mxu0 0
      %2009 = vmatpush2.bf16.msra.mxu0 0
      %2010 = vmatprep.subr.bf16.mxu0 0
      %2011 = vmatpush2.bf16.msra.mxu0 0
      %2012 = vmatprep.subr.bf16.mxu0 0
      %2013 = vmatpush2.bf16.msra.mxu0 0
      %2014 = vmatprep.subr.bf16.mxu0 0
      %2015 = vmatpush2.bf16.msra.mxu0 0
      %2016 = vmatprep.subr.bf16.mxu0 0
      %2017 = vmatpush2.bf16.msra.mxu0 0
      %2018 = vmatprep.subr.bf16.mxu0 0
      %2019 = vmatpush2.bf16.msra.mxu0 0
      %2020 = vmatprep.subr.bf16.mxu0 0
      %2021 = vmatpush2.bf16.msra.mxu0 0
      %2022 = vmatprep.mubr.bf16.mxu0 0
      %2023 = vmatmul.mubr.bf16.gmra.mxu0 %v1988
      %v2024 = vpop.f32.mrf.mxu0
      %v2025 = vadd.f32 0.0, %v2024
      %v2026 = vpop.f32.mrf.mxu0
      %v2027 = vpop.f32.mrf.mxu0
      %v2028 = vpop.f32.mrf.mxu0
      %2029 = vdwg.mxu0
      %v2030 = vld [vmem:[%s1813] sm:$0xf]
      %v2031 = vld [vmem:[%s1813 + $0x4] sm:$0xf]
      %v2032 = vld [vmem:[%s1813 + $0x8] sm:$0xf]
      %v2033 = vld [vmem:[%s1813 + $0xc] sm:$0xf]
      %v2034 = vld [vmem:[%s1813 + $0x10] sm:$0xf]
      %v2035 = vld [vmem:[%s1813 + $0x14] sm:$0xf]
      %v2036 = vld [vmem:[%s1813 + $0x18] sm:$0xf]
      %v2037 = vld [vmem:[%s1813 + $0x1c] sm:$0xf]
      %v2046 = vunpack.c.l.b16 %v2030
      %v2047 = vunpack.c.l.b16 %v2031
      %v2048 = vunpack.c.l.b16 %v2032
      %v2049 = vunpack.c.l.b16 %v2033
      %v2050 = vunpack.c.l.b16 %v2034
      %v2051 = vunpack.c.l.b16 %v2035
      %v2052 = vunpack.c.l.b16 %v2036
      %v2053 = vunpack.c.l.b16 %v2037
      %v2054 = vpack.c.b16 %v2047, %v2046
      %v2055 = vpack.c.b16 %v2049, %v2048
      %v2056 = vpack.c.b16 %v2051, %v2050
      %v2057 = vpack.c.b16 %v2053, %v2052
      %2062 = vmatprep.subr.bf16.mxu0 0
      %2063 = vmatpush1.bf16.msra.mxu0 0
      %2064 = vmatprep.subr.bf16.mxu0 0
      %2065 = vmatpush1.bf16.msra.mxu0 0
      %2066 = vmatprep.subr.bf16.mxu0 0
      %2067 = vmatpush1.bf16.msra.mxu0 0
      %2068 = vmatprep.subr.bf16.mxu0 0
      %2069 = vmatpush1.bf16.msra.mxu0 0
      %2070 = vmatprep.subr.bf16.mxu0 0
      %2071 = vmatpush1.bf16.msra.mxu0 %v2057
      %2072 = vmatprep.subr.bf16.mxu0 0
      %2073 = vmatpush1.bf16.msra.mxu0 %v2056
      %2074 = vmatprep.subr.bf16.mxu0 0
      %2075 = vmatpush1.bf16.msra.mxu0 %v2055
      %2076 = vmatprep.subr.bf16.mxu0 0
      %2077 = vmatpush1.bf16.msra.mxu0 %v2054
      %2078 = vmatprep.subr.bf16.mxu0 0
      %2079 = vmatpush2.bf16.msra.mxu0 0
      %2080 = vmatprep.subr.bf16.mxu0 0
      %2081 = vmatpush2.bf16.msra.mxu0 0
      %2082 = vmatprep.subr.bf16.mxu0 0
      %2083 = vmatpush2.bf16.msra.mxu0 0
      %2084 = vmatprep.subr.bf16.mxu0 0
      %2085 = vmatpush2.bf16.msra.mxu0 0
      %2086 = vmatprep.subr.bf16.mxu0 0
      %2087 = vmatpush2.bf16.msra.mxu0 0
      %2088 = vmatprep.subr.bf16.mxu0 0
      %2089 = vmatpush2.bf16.msra.mxu0 0
      %2090 = vmatprep.subr.bf16.mxu0 0
      %2091 = vmatpush2.bf16.msra.mxu0 0
      %2092 = vmatprep.subr.bf16.mxu0 0
      %2093 = vmatpush2.bf16.msra.mxu0 0
      %2094 = vmatprep.mubr.bf16.mxu0 0
      %2095 = vmatmul.mubr.bf16.gmra.mxu0 %v1988
      %v2096 = vpop.f32.mrf.mxu0
      %v2097 = vadd.f32 0.0, %v2096
      %v2098 = vpop.f32.mrf.mxu0
      %v2099 = vpop.f32.mrf.mxu0
      %v2100 = vpop.f32.mrf.mxu0
      %2101 = vdwg.mxu0
      %v2102 = vsel %vm1886, %v2025, -inf
      %v2103 = vrot.slane %v2102, 4
      %v2104 = vmax.f32 %v2102, %v2103
      %v2105 = vrot.slane %v2104, 2
      %v2106 = vmax.f32 %v2104, %v2105
      %v2107 = vrot.slane %v2106, 1
      %v2108 = vmax.f32 %v2106, %v2107
      %v2109 = vsel %vm1886, %v2097, -inf
      %v2110 = vrot.slane %v2109, 4
      %v2111 = vmax.f32 %v2109, %v2110
      %v2112 = vrot.slane %v2111, 2
      %v2113 = vmax.f32 %v2111, %v2112
      %v2114 = vrot.slane %v2113, 1
      %v2115 = vmax.f32 %v2113, %v2114
      %v2116 = vmax.f32 %v2108, %v2115
      %v2117 = vsub.f32 %v2025, %v2116
      %v2118 = vmul.f32 %v2117, 1.442695
      %v2119 = vpow.pop %v2118
      %v2120 = vsel %vm1886, %v2119, 0.0
      %v2121 = vrot.slane %v2120, 4
      %v2122 = vadd.f32 %v2120, %v2121
      %v2123 = vrot.slane %v2122, 2
      %v2124 = vadd.f32 %v2122, %v2123
      %v2125 = vrot.slane %v2124, 1
      %v2126 = vadd.f32 %v2124, %v2125
      %2128 = vset.pattern.permute.xlu0 16
      %2129 = vperm.xlu0 %2128, %v2025
      %v2130 = vpop.permute.xlu0 %2129
      %v2132 = vmul.f32 %v2119, %v2130
      %v2133 = vsel %vm1886, %v2132, 0.0
      %v2134 = vrot.slane %v2133, 4
      %v2135 = vadd.f32 %v2133, %v2134
      %v2136 = vrot.slane %v2135, 2
      %v2137 = vadd.f32 %v2135, %v2136
      %v2138 = vrot.slane %v2137, 1
      %v2139 = vadd.f32 %v2137, %v2138
      %v2140 = vsub.f32 %v2097, %v2116
      %v2141 = vmul.f32 %v2140, 1.442695
      %v2142 = vpow.pop %v2141
      %v2143 = vsel %vm1886, %v2142, 0.0
      %v2144 = vrot.slane %v2143, 4
      %v2145 = vadd.f32 %v2143, %v2144
      %v2146 = vrot.slane %v2145, 2
      %v2147 = vadd.f32 %v2145, %v2146
      %v2148 = vrot.slane %v2147, 1
      %v2149 = vadd.f32 %v2147, %v2148
      %2151 = vset.pattern.permute.xlu0 16
      %2152 = vperm.xlu0 %2151, %v2097
      %v2153 = vpop.permute.xlu0 %2152
      %v2155 = vmul.f32 %v2142, %v2153
      %v2156 = vsel %vm1886, %v2155, 0.0
      %v2157 = vrot.slane %v2156, 4
      %v2158 = vadd.f32 %v2156, %v2157
      %v2159 = vrot.slane %v2158, 2
      %v2160 = vadd.f32 %v2158, %v2159
      %v2161 = vrot.slane %v2160, 1
      %v2162 = vadd.f32 %v2160, %v2161
      %v2163 = vadd.f32 %v2126, %v2149
      %v2164 = vadd.f32 %v2139, %v2162
      %v2165 = vrcp.pop %v2163
      %v2166 = vmul.f32 %v2164, %v2165
      %s2167 = scalar_lea.vmem %s278, 1
      %2168 = vst.msk [vmem:[%s2167] sm:$0x1] %vm1952, %v2166
      %s2169 = smul.u32 2, %s18
      %p2170 = scmp.lt.s32.totalorder %s2169, 3
      %s2171 = scalar_select %p2170, %s2169, 3
      %s2172 = scalar_lea.vmem %s7, %s2171
      // Predicated region
      $region49: #{_lambda_.1} parent=47 // pred_check
        %p2173 = pneg %p188
      $region50: #{_lambda_.1} parent=47 // pred_check_branch
        %2175 = sbr.rel (%p2173) target = $region52
      $region51: #{_lambda_.1} parent=47 // pred_region
        %s2176 = smul.u32 2, %s18
      $region52: #{_lambda_.1} parent=47 // pred_fallthru
        _
    $region48: #{_lambda_.1} parent=5 // pred_fallthru
      _
    %p2177 = scmp.le.s32.totalorder 2, %s13
    // Predicated region
    $region53: #{_lambda_.1} parent=5 // pred_check
      %p2178 = pneg %p2177
    $region54: #{_lambda_.1} parent=5 // pred_check_branch
      %2180 = sbr.rel (%p2178) target = $region56
    $region55: #{_lambda_.1} parent=5 // pred_region
      %s2181 = ssub.s32 %s13, 2
      // Predicated region
      $region57: #{_lambda_.1} parent=55 // pred_check
        %p2182 = pneg %p194
      $region58: #{_lambda_.1} parent=55 // pred_check_branch
        %2184 = sbr.rel (%p2182) target = $region60
      $region59: #{_lambda_.1} parent=55 // pred_region
        %s2185 = smul.u32 2, %s19
        %p2186 = scmp.lt.s32.totalorder %s2185, 3
        %s2187 = scalar_select %p2186, %s2185, 3
        %s2188 = scalar_lea.vmem %s7, %s2187
      $region60: #{_lambda_.1} parent=55 // pred_fallthru
        _
    $region56: #{_lambda_.1} parent=5 // pred_fallthru
      _
  $region6: #{_lambda_.1} parent=0 // loop_footer
    %s17 = sadd.s32 1, %s13
  $region7: #{_lambda_.1} parent=0 // loop_footer_branch
    %12 = sbr.rel target = $region3
  $region8: #{_lambda_.1} parent=0 // loop_exit
    _

</llo_original>
